<compile_context>
chip_gen: v7x
topology: tpu7x:2x2x1
jax: 0.10.0
libtpu: 0.0.40
codegen_flags: <defaults>
</compile_context>

<pallas_src>
from functools import partial

import jax
import jax.numpy as jnp
from jax import lax
from jax.experimental import pallas as pl
from jax.experimental.pallas import tpu as pltpu


def _round_up(x, m):
    return ((x + m - 1) // m) * m


# --------------------------------------------------------------------------- #
# Kernel: the full `depth`-layer stack on one (Bt*L, Dp) activation tile.
# --------------------------------------------------------------------------- #
def encoder_stack_kernel(
    x_ref,
    ln1_g_ref, ln1_b_ref,
    wqkv_ref, bqkv_ref,
    wo_ref, bo_ref,
    ln2_g_ref, ln2_b_ref,
    w1_ref, b1_ref,
    w2_ref, b2_ref,
    seg_f_ref, seg_b_ref,
    out_ref,
    *, d_model, seq_len, bt):
    layer = pl.program_id(1)
    eps = 1e-5
    inv_d = 1.0 / d_model
    bf16, f32 = jnp.bfloat16, jnp.float32

    # Load the HBM tile only on the first layer; afterwards the activation is
    # carried in the (revisited) output block, which stays VMEM-resident until
    # the batch-tile index changes.
    @pl.when(layer == 0)
    def _():
        out_ref[...] = x_ref[...]

    x = out_ref[...]                                       # (Bt*L, Dp) f32
    hd_p = wo_ref.shape[0]                                 # padded n_head*dim_head

    def layer_norm(v, g, b):
        # Padded lanes of v are zero; divide by the *real* D so stats match the
        # unpadded LayerNorm. gamma/beta are zero in padded lanes -> output of
        # the padded lanes stays exactly zero.
        mu = jnp.sum(v, axis=-1, keepdims=True) * inv_d
        ex2 = jnp.sum(v * v, axis=-1, keepdims=True) * inv_d
        var = jnp.maximum(ex2 - mu * mu, 0.0)
        return (v - mu) * lax.rsqrt(var + eps) * g + b

    # ---- LayerNorm -> fused QKV projection (bf16 MXU, f32 accumulation) ----
    xn = layer_norm(x, ln1_g_ref[...], ln1_b_ref[...])
    qkv = jnp.dot(xn.astype(bf16), wqkv_ref[...],
                  preferred_element_type=f32) + bqkv_ref[...]
    q = qkv[:, 0 * hd_p:1 * hd_p]                          # 128-aligned lane slices
    k = qkv[:, 1 * hd_p:2 * hd_p]
    v = qkv[:, 2 * hd_p:3 * hd_p]

    # ---- Q feature-map softmax, all heads fused & lane-dense ----
    # Row max over the full hd_p lanes is a per-row constant -> cancels inside
    # each per-head softmax ratio.  Per-head denominators via one MXU matmul
    # against the resident block-diagonal ones matrix.
    # TODO(synk): feature map assumed softmax; swap for elu+1 if repo differs.
    seg_f = seg_f_ref[...]                                 # (hd_p, hd_p) f32 0/1 mask
    qm = jnp.max(q, axis=-1, keepdims=True)
    qe = jnp.exp(q - qm)
    q_den = jnp.dot(qe.astype(bf16), seg_b_ref[...], preferred_element_type=f32)
    qs = qe * pl.reciprocal(q_den, approx=True)            # (Bt*L, hd_p)

    # ---- linear attention: per-batch K softmax (seq dim) + K^T V context ----
    ah_parts = []
    for b in range(bt):                                    # static, unrolled
        r0 = b * seq_len
        k_b = k[r0:r0 + seq_len, :]
        v_b = v[r0:r0 + seq_len, :]
        q_b = qs[r0:r0 + seq_len, :]
        km = jnp.max(k_b, axis=0, keepdims=True)
        ke = jnp.exp(k_b - km)
        ks_b = ke * pl.reciprocal(jnp.sum(ke, axis=0, keepdims=True), approx=True)
        # K^T V without an explicit transpose (MXU transposed-operand path).
        ctx = lax.dot_general(ks_b.astype(bf16), v_b.astype(bf16),
                              (((0,), (0,)), ((), ())),
                              preferred_element_type=f32)   # (hd_p, hd_p)
        ctx = ctx * seg_f                                   # block-diag head mask
        ah_parts.append(jnp.dot(q_b.astype(bf16), ctx.astype(bf16),
                                preferred_element_type=f32))
    ah = ah_parts[0] if bt == 1 else jnp.concatenate(ah_parts, axis=0)

    attn = jnp.dot(ah.astype(bf16), wo_ref[...],
                   preferred_element_type=f32) + bo_ref[...]
    x = x + attn                                           # residual 1

    # ---- LayerNorm -> FeedForward (Linear -> ReLU -> Linear) ----
    xn2 = layer_norm(x, ln2_g_ref[...], ln2_b_ref[...])
    h = jnp.dot(xn2.astype(bf16), w1_ref[...],
                preferred_element_type=f32) + b1_ref[...]
    h = jnp.maximum(h, 0.0)        # TODO(synk): activation assumed ReLU
    mlp = jnp.dot(h.astype(bf16), w2_ref[...],
                  preferred_element_type=f32) + b2_ref[...]

    out_ref[...] = x + mlp                                 # residual 2, stays resident


# --------------------------------------------------------------------------- #
# Wrapper
# --------------------------------------------------------------------------- #
def transformer_encoder_forward(x, params, seg_f32, seg_bf16):
    """x: (L, n_batch, dim_model) f32 -> (L, n_batch, dim_model) f32."""
    L, B, D = x.shape
    depth = params[0].shape[0]
    Dp = params[2].shape[1]                   # wqkv: (depth, Dp, 3*hdp)
    hdp = params[4].shape[1]                  # wo:   (depth, hdp, Dp)
    Mp = params[8].shape[2]                   # w1:   (depth, Dp, Mp)

    # batch-major flat slab, zero-padded to a lane-dense (multiple-of-128) width
    xb = jnp.transpose(x, (1, 0, 2)).reshape(B * L, D)
    if Dp != D:
        xb = jnp.pad(xb, ((0, 0), (0, Dp - D)))

    # Rows per grid step: aim for >=256 MXU rows; keep the batch tile an exact
    # divisor of B and sublane (8) aligned.
    bt = max(1, min(B, -(-256 // max(L, 1))))
    while bt > 1 and (B % bt != 0 or (bt * L) % 8 != 0):
        bt -= 1
    if B % bt != 0 or ((bt * L) % 8 != 0 and bt != B):
        bt = B
    nb = B // bt
    rows = bt * L
    # TODO(synk): on v7x, when B is large prefer an even number of batch tiles
    #             so both TensorCores stay busy (nb >= 2).

    def stacked(p):        # per-layer weight, layer-indexed -> prefetched per layer
        return pl.BlockSpec((None,) + p.shape[1:], lambda b, l: (l, 0, 0))

    def resident(p):       # constant block index -> fetched once, stays in VMEM
        return pl.BlockSpec(p.shape, lambda b, l: (0, 0))

    in_specs = ([pl.BlockSpec((rows, Dp), lambda b, l: (b, 0))]
                + [stacked(p) for p in params]
                + [resident(seg_f32), resident(seg_bf16)])
    out_specs = pl.BlockSpec((rows, Dp), lambda b, l: (b, 0))

    # Generation-aware VMEM budget (v7x has only 64 MiB per TensorCore).
    weight_step_bytes = sum(int(p.size) // depth * p.dtype.itemsize for p in params)
    act_bytes = rows * Dp * 4
    tmp_bytes = rows * (3 * hdp + Mp + 4 * Dp) * 4 + 2 * hdp * hdp * 4
    seg_bytes = int(seg_f32.size) * 4 + int(seg_bf16.size) * 2
    need = 2 * weight_step_bytes + 4 * act_bytes + 2 * tmp_bytes + seg_bytes + (4 << 20)
    try:
        vmem_cap = int(pltpu.get_tpu_info().vmem_capacity_bytes)
    except Exception:
        vmem_cap = 64 * 2 ** 20           # conservative fallback (v7x per-TC VMEM)
    vmem_limit = int(min(max(32 * 2 ** 20, need), (vmem_cap * 3) // 4))

    flops_proj = 2 * B * L * (Dp * 3 * hdp + hdp * Dp + 2 * Dp * Mp)
    flops_attn = 2 * B * (2 * L * hdp * hdp) + 2 * B * L * hdp * hdp
    cost = pl.CostEstimate(
        flops=int(depth * (flops_proj + flops_attn)),
        transcendentals=int(depth * 2 * B * L * hdp),
        bytes_accessed=int(2 * B * L * Dp * 4 + nb * depth * weight_step_bytes),
    )

    out = pl.pallas_call(
        partial(encoder_stack_kernel, d_model=D, seq_len=L, bt=bt),
        out_shape=jax.ShapeDtypeStruct((B * L, Dp), jnp.float32),
        grid_spec=pltpu.PrefetchScalarGridSpec(
            num_scalar_prefetch=0,
            grid=(nb, depth),                 # depth innermost ("arbitrary")
            in_specs=in_specs,
            out_specs=out_specs,
        ),
        compiler_params=pltpu.CompilerParams(
            dimension_semantics=("parallel", "arbitrary"),
            vmem_limit_bytes=vmem_limit,
        ),
        cost_estimate=cost,
        input_output_aliases={0: 0},          # reuse the activation HBM buffer
    )(xb, *params, seg_f32, seg_bf16)

    out = out[:, :D].reshape(B, L, D)
    return jnp.transpose(out, (1, 0, 2))


transformer_encoder = jax.jit(transformer_encoder_forward)


# --------------------------------------------------------------------------- #
# Parameter construction (PyTorch-equivalent f32 params) and packing
# --------------------------------------------------------------------------- #
def init_block_params(key, dim_model, dim_head, n_head, dim_mlp):
    """Unpadded f32 params for one encoder block, (in, out) weight layout."""
    D, hd = dim_model, n_head * dim_head
    ks = jax.random.split(key, 4)
    s = 0.02
    lin = lambda k, i, o: jax.random.normal(k, (i, o), jnp.float32) * s
    return dict(
        ln1_g=jnp.ones((D,), jnp.float32), ln1_b=jnp.zeros((D,), jnp.float32),
        wqkv=lin(ks[0], D, 3 * hd), bqkv=jnp.zeros((3 * hd,), jnp.float32),
        wo=lin(ks[1], hd, D), bo=jnp.zeros((D,), jnp.float32),
        ln2_g=jnp.ones((D,), jnp.float32), ln2_b=jnp.zeros((D,), jnp.float32),
        w1=lin(ks[2], D, dim_mlp), b1=jnp.zeros((dim_mlp,), jnp.float32),
        w2=lin(ks[3], dim_mlp, D), b2=jnp.zeros((D,), jnp.float32),
    )


def pack_encoder_params(layers, dim_model, dim_head, n_head, dim_mlp):
    """Zero-pad feature dims to 128-multiples, cast matmul weights to bf16,
    stack along the depth axis (for the fused-depth grid)."""
    D, hd, mlp = dim_model, n_head * dim_head, dim_mlp
    Dp, hdp, Mp = (_round_up(v, 128) for v in (D, hd, mlp))
    bf16, f32 = jnp.bfloat16, jnp.float32

    def pad_mat(w, r, c):
        return jnp.pad(w, ((0, r - w.shape[0]), (0, c - w.shape[1]))).astype(bf16)

    def pad_vec(b, c):
        return jnp.pad(b, (0, c - b.shape[0]))[None, :].astype(f32)

    def pad_qkv_w(w):   # pad each of the q/k/v column chunks to hdp
        parts = [pad_mat(w[:, i * hd:(i + 1) * hd], Dp, hdp) for i in range(3)]
        return jnp.concatenate(parts, axis=1)

    def pad_qkv_b(b):
        parts = [pad_vec(b[i * hd:(i + 1) * hd], hdp) for i in range(3)]
        return jnp.concatenate(parts, axis=1)

    packers = [
        lambda p: pad_vec(p["ln1_g"], Dp),
        lambda p: pad_vec(p["ln1_b"], Dp),
        lambda p: pad_qkv_w(p["wqkv"]),
        lambda p: pad_qkv_b(p["bqkv"]),
        lambda p: pad_mat(p["wo"], hdp, Dp),
        lambda p: pad_vec(p["bo"], Dp),
        lambda p: pad_vec(p["ln2_g"], Dp),
        lambda p: pad_vec(p["ln2_b"], Dp),
        lambda p: pad_mat(p["w1"], Dp, Mp),
        lambda p: pad_vec(p["b1"], Mp),
        lambda p: pad_mat(p["w2"], Mp, Dp),
        lambda p: pad_vec(p["b2"], Dp),
    ]
    return [jnp.stack([pk(layer) for layer in layers]) for pk in packers]


def make_head_masks(n_head, dim_head, hdp):
    """Block-diagonal (per-head) 0/1 matrix; padded lanes get an isolated
    identity diagonal so denominators stay finite and cross-terms stay zero."""
    hd = n_head * dim_head
    lane = jnp.arange(hdp)
    head = jnp.where(lane < hd, lane // dim_head, n_head + lane)
    m = (head[:, None] == head[None, :]).astype(jnp.float32)
    return m, m.astype(jnp.bfloat16)


# --------------------------------------------------------------------------- #
if __name__ == "__main__":
    # small shapes; forward signature matches the module: x is (L, n_batch, dim_model)
    L, B = 8, 2
    dim_model, dim_head, n_head, dim_mlp, depth = 32, 8, 4, 64, 2

    root = jax.random.PRNGKey(0)
    kx, kp = jax.random.split(root)
    x = jax.random.normal(kx, (L, B, dim_model), jnp.float32)

    layer_keys = jax.random.split(kp, depth)
    layers = [init_block_params(layer_keys[i], dim_model, dim_head, n_head, dim_mlp)
              for i in range(depth)]
    params = pack_encoder_params(layers, dim_model, dim_head, n_head, dim_mlp)
    hdp = params[4].shape[1]
    seg_f32, seg_bf16 = make_head_masks(n_head, dim_head, hdp)

    out = transformer_encoder(x, params, seg_f32, seg_bf16)
    out = jax.block_until_ready(out)
    assert out.shape == (L, B, dim_model) and out.dtype == jnp.float32
    assert bool(jnp.all(jnp.isfinite(out)))
    print("KERNEL_OK")
</pallas_src>

<mosaic_0001>
module attributes {stable_mosaic.version = 11 : i64} {
  func.func @encoder_stack_kernel(%arg0: i32, %arg1: i32, %arg2: memref<16x128xf32, #tpu.memory_space<vmem>>, %arg3: memref<1x1x128xf32, #tpu.memory_space<vmem>>, %arg4: memref<1x1x128xf32, #tpu.memory_space<vmem>>, %arg5: memref<1x128x384xbf16, #tpu.memory_space<vmem>>, %arg6: memref<1x1x384xf32, #tpu.memory_space<vmem>>, %arg7: memref<1x128x128xbf16, #tpu.memory_space<vmem>>, %arg8: memref<1x1x128xf32, #tpu.memory_space<vmem>>, %arg9: memref<1x1x128xf32, #tpu.memory_space<vmem>>, %arg10: memref<1x1x128xf32, #tpu.memory_space<vmem>>, %arg11: memref<1x128x128xbf16, #tpu.memory_space<vmem>>, %arg12: memref<1x1x128xf32, #tpu.memory_space<vmem>>, %arg13: memref<1x128x128xbf16, #tpu.memory_space<vmem>>, %arg14: memref<1x1x128xf32, #tpu.memory_space<vmem>>, %arg15: memref<128x128xf32, #tpu.memory_space<vmem>>, %arg16: memref<128x128xbf16, #tpu.memory_space<vmem>>, %arg17: memref<16x128xf32, #tpu.memory_space<vmem>>) attributes {dimension_semantics = [#tpu.dimension_semantics<parallel>, #tpu.dimension_semantics<arbitrary>], iteration_bounds = array<i64: 1, 2>, scalar_prefetch = 0 : i64, scratch_operands = 0 : i64, tpu.core_type = #tpu.core_type<tc>, window_params = [{transform_indices = @transform_0, window_bounds = array<i64: 16, 128>}, {transform_indices = @transform_1, window_bounds = array<i64: 1, 1, 128>}, {transform_indices = @transform_2, window_bounds = array<i64: 1, 1, 128>}, {transform_indices = @transform_3, window_bounds = array<i64: 1, 128, 384>}, {transform_indices = @transform_4, window_bounds = array<i64: 1, 1, 384>}, {transform_indices = @transform_5, window_bounds = array<i64: 1, 128, 128>}, {transform_indices = @transform_6, window_bounds = array<i64: 1, 1, 128>}, {transform_indices = @transform_7, window_bounds = array<i64: 1, 1, 128>}, {transform_indices = @transform_8, window_bounds = array<i64: 1, 1, 128>}, {transform_indices = @transform_9, window_bounds = array<i64: 1, 128, 128>}, {transform_indices = @transform_10, window_bounds = array<i64: 1, 1, 128>}, {transform_indices = @transform_11, window_bounds = array<i64: 1, 128, 128>}, {transform_indices = @transform_12, window_bounds = array<i64: 1, 1, 128>}, {pipeline_mode = #tpu.pipeline_mode<synchronous>, transform_indices = @transform_13, window_bounds = array<i64: 128, 128>}, {pipeline_mode = #tpu.pipeline_mode<synchronous>, transform_indices = @transform_14, window_bounds = array<i64: 128, 128>}, {transform_indices = @transform_15, window_bounds = array<i64: 16, 128>}]} {
    %c0_i32 = arith.constant 0 : i32
    %0 = arith.cmpi eq, %arg1, %c0_i32 : i32
    %1 = arith.extui %0 : i1 to i32
    %c0_i32_0 = arith.constant 0 : i32
    %2 = arith.cmpi ne, %1, %c0_i32_0 : i32
    scf.if %2 {
      %c0_70 = arith.constant 0 : index
      %c0_71 = arith.constant 0 : index
      %152 = vector.load %arg2[%c0_70, %c0_71] : memref<16x128xf32, #tpu.memory_space<vmem>>, vector<16x128xf32>
      %c0_72 = arith.constant 0 : index
      %c0_73 = arith.constant 0 : index
      %153 = vector.load %arg17[%c0_72, %c0_73] : memref<16x128xf32, #tpu.memory_space<vmem>>, vector<16x128xf32>
      tpu.vector_store %arg17[%c0_72, %c0_73], %152 {strides = array<i32>} : memref<16x128xf32, #tpu.memory_space<vmem>>, vector<16x128xf32>,
    } else {
    }
    %c0 = arith.constant 0 : index
    %c0_1 = arith.constant 0 : index
    %3 = vector.load %arg17[%c0, %c0_1] : memref<16x128xf32, #tpu.memory_space<vmem>>, vector<16x128xf32>
    %c0_2 = arith.constant 0 : index
    %c0_3 = arith.constant 0 : index
    %c0_4 = arith.constant 0 : index
    %4 = vector.load %arg3[%c0_2, %c0_3, %c0_4] : memref<1x1x128xf32, #tpu.memory_space<vmem>>, vector<1x1x128xf32>
    %5 = vector.shape_cast %4 : vector<1x1x128xf32> to vector<1x128xf32>
    %c0_5 = arith.constant 0 : index
    %c0_6 = arith.constant 0 : index
    %c0_7 = arith.constant 0 : index
    %6 = vector.load %arg4[%c0_5, %c0_6, %c0_7] : memref<1x1x128xf32, #tpu.memory_space<vmem>>, vector<1x1x128xf32>
    %7 = vector.shape_cast %6 : vector<1x1x128xf32> to vector<1x128xf32>
    %cst = arith.constant dense<0.000000e+00> : vector<16xf32>
    %8 = vector.multi_reduction <add>, %3, %cst [1] : vector<16x128xf32> to vector<16xf32>
    %9 = vector.shape_cast %8 : vector<16xf32> to vector<16x1xf32>
    %cst_8 = arith.constant 3.125000e-02 : f32
    %10 = vector.broadcast %cst_8 : f32 to vector<16x1xf32>
    %11 = arith.mulf %9, %10 : vector<16x1xf32>
    %12 = arith.mulf %3, %3 : vector<16x128xf32>
    %cst_9 = arith.constant dense<0.000000e+00> : vector<16xf32>
    %13 = vector.multi_reduction <add>, %12, %cst_9 [1] : vector<16x128xf32> to vector<16xf32>
    %14 = vector.shape_cast %13 : vector<16xf32> to vector<16x1xf32>
    %cst_10 = arith.constant 3.125000e-02 : f32
    %15 = vector.broadcast %cst_10 : f32 to vector<16x1xf32>
    %16 = arith.mulf %14, %15 : vector<16x1xf32>
    %17 = arith.mulf %11, %11 : vector<16x1xf32>
    %18 = arith.subf %16, %17 : vector<16x1xf32>
    %cst_11 = arith.constant 0.000000e+00 : f32
    %19 = vector.broadcast %cst_11 : f32 to vector<16x1xf32>
    %20 = arith.maximumf %18, %19 : vector<16x1xf32>
    %21 = vector.broadcast %11 : vector<16x1xf32> to vector<16x128xf32>
    %22 = arith.subf %3, %21 : vector<16x128xf32>
    %cst_12 = arith.constant 9.99999974E-6 : f32
    %23 = vector.broadcast %cst_12 : f32 to vector<16x1xf32>
    %24 = arith.addf %20, %23 : vector<16x1xf32>
    %25 = math.rsqrt %24 : vector<16x1xf32>
    %26 = vector.broadcast %25 : vector<16x1xf32> to vector<16x128xf32>
    %27 = arith.mulf %22, %26 : vector<16x128xf32>
    %28 = vector.broadcast %5 : vector<1x128xf32> to vector<16x128xf32>
    %29 = arith.mulf %27, %28 : vector<16x128xf32>
    %30 = vector.broadcast %7 : vector<1x128xf32> to vector<16x128xf32>
    %31 = arith.addf %29, %30 : vector<16x128xf32>
    %32 = arith.truncf %31 : vector<16x128xf32> to vector<16x128xbf16>
    %c0_13 = arith.constant 0 : index
    %c0_14 = arith.constant 0 : index
    %c0_15 = arith.constant 0 : index
    %33 = vector.load %arg5[%c0_13, %c0_14, %c0_15] : memref<1x128x384xbf16, #tpu.memory_space<vmem>>, vector<1x128x384xbf16>
    %34 = vector.shape_cast %33 : vector<1x128x384xbf16> to vector<128x384xbf16>
    %cst_16 = arith.constant dense<0.000000e+00> : vector<16x384xf32>
    %35 = tpu.matmul %32, %34, %cst_16 {dimension_numbers = #tpu.dot_dimension_numbers<[1], [0], [0], [1], [0, 0, 1, 1], [], []>} : vector<16x128xbf16>, vector<128x384xbf16>, vector<16x384xf32> -> vector<16x384xf32>
    %c0_17 = arith.constant 0 : index
    %c0_18 = arith.constant 0 : index
    %c0_19 = arith.constant 0 : index
    %36 = vector.load %arg6[%c0_17, %c0_18, %c0_19] : memref<1x1x384xf32, #tpu.memory_space<vmem>>, vector<1x1x384xf32>
    %37 = vector.shape_cast %36 : vector<1x1x384xf32> to vector<1x384xf32>
    %38 = vector.broadcast %37 : vector<1x384xf32> to vector<16x384xf32>
    %39 = arith.addf %35, %38 : vector<16x384xf32>
    %40 = vector.extract_strided_slice %39 {offsets = [0, 0], sizes = [16, 128], strides = [1, 1]} : vector<16x384xf32> to vector<16x128xf32>
    %41 = vector.extract_strided_slice %39 {offsets = [0, 128], sizes = [16, 128], strides = [1, 1]} : vector<16x384xf32> to vector<16x128xf32>
    %42 = vector.extract_strided_slice %39 {offsets = [0, 256], sizes = [16, 128], strides = [1, 1]} : vector<16x384xf32> to vector<16x128xf32>
    %c0_20 = arith.constant 0 : index
    %c0_21 = arith.constant 0 : index
    %43 = vector.load %arg15[%c0_20, %c0_21] : memref<128x128xf32, #tpu.memory_space<vmem>>, vector<128x128xf32>
    %cst_22 = arith.constant dense<0xFF800000> : vector<16xf32>
    %44 = vector.multi_reduction <maximumf>, %40, %cst_22 [1] : vector<16x128xf32> to vector<16xf32>
    %45 = vector.shape_cast %44 : vector<16xf32> to vector<16x1xf32>
    %46 = vector.broadcast %45 : vector<16x1xf32> to vector<16x128xf32>
    %47 = arith.subf %40, %46 : vector<16x128xf32>
    %48 = math.exp %47 : vector<16x128xf32>
    %49 = arith.truncf %48 : vector<16x128xf32> to vector<16x128xbf16>
    %c0_23 = arith.constant 0 : index
    %c0_24 = arith.constant 0 : index
    %50 = vector.load %arg16[%c0_23, %c0_24] : memref<128x128xbf16, #tpu.memory_space<vmem>>, vector<128x128xbf16>
    %cst_25 = arith.constant dense<0.000000e+00> : vector<16x128xf32>
    %51 = tpu.matmul %49, %50, %cst_25 {dimension_numbers = #tpu.dot_dimension_numbers<[1], [0], [0], [1], [0, 0, 1, 1], [], []>} : vector<16x128xbf16>, vector<128x128xbf16>, vector<16x128xf32> -> vector<16x128xf32>
    %52 = tpu.reciprocal %51 {approx = true} : vector<16x128xf32> -> vector<16x128xf32>
    %53 = arith.mulf %48, %52 : vector<16x128xf32>
    %54 = vector.extract_strided_slice %41 {offsets = [0, 0], sizes = [8, 128], strides = [1, 1]} : vector<16x128xf32> to vector<8x128xf32>
    %55 = vector.extract_strided_slice %42 {offsets = [0, 0], sizes = [8, 128], strides = [1, 1]} : vector<16x128xf32> to vector<8x128xf32>
    %56 = vector.extract_strided_slice %53 {offsets = [0, 0], sizes = [8, 128], strides = [1, 1]} : vector<16x128xf32> to vector<8x128xf32>
    %cst_26 = arith.constant dense<0xFF800000> : vector<128xf32>
    %57 = vector.multi_reduction <maximumf>, %54, %cst_26 [0] : vector<8x128xf32> to vector<128xf32>
    %58 = vector.shape_cast %57 : vector<128xf32> to vector<1x128xf32>
    %59 = vector.broadcast %58 : vector<1x128xf32> to vector<8x128xf32>
    %60 = arith.subf %54, %59 : vector<8x128xf32>
    %61 = math.exp %60 : vector<8x128xf32>
    %cst_27 = arith.constant dense<0.000000e+00> : vector<128xf32>
    %62 = vector.multi_reduction <add>, %61, %cst_27 [0] : vector<8x128xf32> to vector<128xf32>
    %63 = vector.shape_cast %62 : vector<128xf32> to vector<1x128xf32>
    %64 = tpu.reciprocal %63 {approx = true} : vector<1x128xf32> -> vector<1x128xf32>
    %65 = vector.broadcast %64 : vector<1x128xf32> to vector<8x128xf32>
    %66 = arith.mulf %61, %65 : vector<8x128xf32>
    %67 = arith.truncf %66 : vector<8x128xf32> to vector<8x128xbf16>
    %68 = arith.truncf %55 : vector<8x128xf32> to vector<8x128xbf16>
    %cst_28 = arith.constant dense<0.000000e+00> : vector<128x128xf32>
    %69 = tpu.matmul %67, %68, %cst_28 {dimension_numbers = #tpu.dot_dimension_numbers<[0], [0], [1], [1], [0, 1, 1, 1], [], []>} : vector<8x128xbf16>, vector<8x128xbf16>, vector<128x128xf32> -> vector<128x128xf32>
    %70 = arith.mulf %69, %43 : vector<128x128xf32>
    %71 = arith.truncf %56 : vector<8x128xf32> to vector<8x128xbf16>
    %72 = arith.truncf %70 : vector<128x128xf32> to vector<128x128xbf16>
    %cst_29 = arith.constant dense<0.000000e+00> : vector<8x128xf32>
    %73 = tpu.matmul %71, %72, %cst_29 {dimension_numbers = #tpu.dot_dimension_numbers<[1], [0], [0], [1], [0, 0, 1, 1], [], []>} : vector<8x128xbf16>, vector<128x128xbf16>, vector<8x128xf32> -> vector<8x128xf32>
    %74 = vector.extract_strided_slice %41 {offsets = [8, 0], sizes = [8, 128], strides = [1, 1]} : vector<16x128xf32> to vector<8x128xf32>
    %75 = vector.extract_strided_slice %42 {offsets = [8, 0], sizes = [8, 128], strides = [1, 1]} : vector<16x128xf32> to vector<8x128xf32>
    %76 = vector.extract_strided_slice %53 {offsets = [8, 0], sizes = [8, 128], strides = [1, 1]} : vector<16x128xf32> to vector<8x128xf32>
    %cst_30 = arith.constant dense<0xFF800000> : vector<128xf32>
    %77 = vector.multi_reduction <maximumf>, %74, %cst_30 [0] : vector<8x128xf32> to vector<128xf32>
    %78 = vector.shape_cast %77 : vector<128xf32> to vector<1x128xf32>
    %79 = vector.broadcast %78 : vector<1x128xf32> to vector<8x128xf32>
    %80 = arith.subf %74, %79 : vector<8x128xf32>
    %81 = math.exp %80 : vector<8x128xf32>
    %cst_31 = arith.constant dense<0.000000e+00> : vector<128xf32>
    %82 = vector.multi_reduction <add>, %81, %cst_31 [0] : vector<8x128xf32> to vector<128xf32>
    %83 = vector.shape_cast %82 : vector<128xf32> to vector<1x128xf32>
    %84 = tpu.reciprocal %83 {approx = true} : vector<1x128xf32> -> vector<1x128xf32>
    %85 = vector.broadcast %84 : vector<1x128xf32> to vector<8x128xf32>
    %86 = arith.mulf %81, %85 : vector<8x128xf32>
    %87 = arith.truncf %86 : vector<8x128xf32> to vector<8x128xbf16>
    %88 = arith.truncf %75 : vector<8x128xf32> to vector<8x128xbf16>
    %cst_32 = arith.constant dense<0.000000e+00> : vector<128x128xf32>
    %89 = tpu.matmul %87, %88, %cst_32 {dimension_numbers = #tpu.dot_dimension_numbers<[0], [0], [1], [1], [0, 1, 1, 1], [], []>} : vector<8x128xbf16>, vector<8x128xbf16>, vector<128x128xf32> -> vector<128x128xf32>
    %90 = arith.mulf %89, %43 : vector<128x128xf32>
    %91 = arith.truncf %76 : vector<8x128xf32> to vector<8x128xbf16>
    %92 = arith.truncf %90 : vector<128x128xf32> to vector<128x128xbf16>
    %cst_33 = arith.constant dense<0.000000e+00> : vector<8x128xf32>
    %93 = tpu.matmul %91, %92, %cst_33 {dimension_numbers = #tpu.dot_dimension_numbers<[1], [0], [0], [1], [0, 0, 1, 1], [], []>} : vector<8x128xbf16>, vector<128x128xbf16>, vector<8x128xf32> -> vector<8x128xf32>
    %94 = tpu.concatenate %73, %93 in 0 : vector<8x128xf32>, vector<8x128xf32> -> vector<16x128xf32>
    %95 = arith.truncf %94 : vector<16x128xf32> to vector<16x128xbf16>
    %c0_34 = arith.constant 0 : index
    %c0_35 = arith.constant 0 : index
    %c0_36 = arith.constant 0 : index
    %96 = vector.load %arg7[%c0_34, %c0_35, %c0_36] : memref<1x128x128xbf16, #tpu.memory_space<vmem>>, vector<1x128x128xbf16>
    %97 = vector.shape_cast %96 : vector<1x128x128xbf16> to vector<128x128xbf16>
    %cst_37 = arith.constant dense<0.000000e+00> : vector<16x128xf32>
    %98 = tpu.matmul %95, %97, %cst_37 {dimension_numbers = #tpu.dot_dimension_numbers<[1], [0], [0], [1], [0, 0, 1, 1], [], []>} : vector<16x128xbf16>, vector<128x128xbf16>, vector<16x128xf32> -> vector<16x128xf32>
    %c0_38 = arith.constant 0 : index
    %c0_39 = arith.constant 0 : index
    %c0_40 = arith.constant 0 : index
    %99 = vector.load %arg8[%c0_38, %c0_39, %c0_40] : memref<1x1x128xf32, #tpu.memory_space<vmem>>, vector<1x1x128xf32>
    %100 = vector.shape_cast %99 : vector<1x1x128xf32> to vector<1x128xf32>
    %101 = vector.broadcast %100 : vector<1x128xf32> to vector<16x128xf32>
    %102 = arith.addf %98, %101 : vector<16x128xf32>
    %103 = arith.addf %3, %102 : vector<16x128xf32>
    %c0_41 = arith.constant 0 : index
    %c0_42 = arith.constant 0 : index
    %c0_43 = arith.constant 0 : index
    %104 = vector.load %arg9[%c0_41, %c0_42, %c0_43] : memref<1x1x128xf32, #tpu.memory_space<vmem>>, vector<1x1x128xf32>
    %105 = vector.shape_cast %104 : vector<1x1x128xf32> to vector<1x128xf32>
    %c0_44 = arith.constant 0 : index
    %c0_45 = arith.constant 0 : index
    %c0_46 = arith.constant 0 : index
    %106 = vector.load %arg10[%c0_44, %c0_45, %c0_46] : memref<1x1x128xf32, #tpu.memory_space<vmem>>, vector<1x1x128xf32>
    %107 = vector.shape_cast %106 : vector<1x1x128xf32> to vector<1x128xf32>
    %cst_47 = arith.constant dense<0.000000e+00> : vector<16xf32>
    %108 = vector.multi_reduction <add>, %103, %cst_47 [1] : vector<16x128xf32> to vector<16xf32>
    %109 = vector.shape_cast %108 : vector<16xf32> to vector<16x1xf32>
    %cst_48 = arith.constant 3.125000e-02 : f32
    %110 = vector.broadcast %cst_48 : f32 to vector<16x1xf32>
    %111 = arith.mulf %109, %110 : vector<16x1xf32>
    %112 = arith.mulf %103, %103 : vector<16x128xf32>
    %cst_49 = arith.constant dense<0.000000e+00> : vector<16xf32>
    %113 = vector.multi_reduction <add>, %112, %cst_49 [1] : vector<16x128xf32> to vector<16xf32>
    %114 = vector.shape_cast %113 : vector<16xf32> to vector<16x1xf32>
    %cst_50 = arith.constant 3.125000e-02 : f32
    %115 = vector.broadcast %cst_50 : f32 to vector<16x1xf32>
    %116 = arith.mulf %114, %115 : vector<16x1xf32>
    %117 = arith.mulf %111, %111 : vector<16x1xf32>
    %118 = arith.subf %116, %117 : vector<16x1xf32>
    %cst_51 = arith.constant 0.000000e+00 : f32
    %119 = vector.broadcast %cst_51 : f32 to vector<16x1xf32>
    %120 = arith.maximumf %118, %119 : vector<16x1xf32>
    %121 = vector.broadcast %111 : vector<16x1xf32> to vector<16x128xf32>
    %122 = arith.subf %103, %121 : vector<16x128xf32>
    %cst_52 = arith.constant 9.99999974E-6 : f32
    %123 = vector.broadcast %cst_52 : f32 to vector<16x1xf32>
    %124 = arith.addf %120, %123 : vector<16x1xf32>
    %125 = math.rsqrt %124 : vector<16x1xf32>
    %126 = vector.broadcast %125 : vector<16x1xf32> to vector<16x128xf32>
    %127 = arith.mulf %122, %126 : vector<16x128xf32>
    %128 = vector.broadcast %105 : vector<1x128xf32> to vector<16x128xf32>
    %129 = arith.mulf %127, %128 : vector<16x128xf32>
    %130 = vector.broadcast %107 : vector<1x128xf32> to vector<16x128xf32>
    %131 = arith.addf %129, %130 : vector<16x128xf32>
    %132 = arith.truncf %131 : vector<16x128xf32> to vector<16x128xbf16>
    %c0_53 = arith.constant 0 : index
    %c0_54 = arith.constant 0 : index
    %c0_55 = arith.constant 0 : index
    %133 = vector.load %arg11[%c0_53, %c0_54, %c0_55] : memref<1x128x128xbf16, #tpu.memory_space<vmem>>, vector<1x128x128xbf16>
    %134 = vector.shape_cast %133 : vector<1x128x128xbf16> to vector<128x128xbf16>
    %cst_56 = arith.constant dense<0.000000e+00> : vector<16x128xf32>
    %135 = tpu.matmul %132, %134, %cst_56 {dimension_numbers = #tpu.dot_dimension_numbers<[1], [0], [0], [1], [0, 0, 1, 1], [], []>} : vector<16x128xbf16>, vector<128x128xbf16>, vector<16x128xf32> -> vector<16x128xf32>
    %c0_57 = arith.constant 0 : index
    %c0_58 = arith.constant 0 : index
    %c0_59 = arith.constant 0 : index
    %136 = vector.load %arg12[%c0_57, %c0_58, %c0_59] : memref<1x1x128xf32, #tpu.memory_space<vmem>>, vector<1x1x128xf32>
    %137 = vector.shape_cast %136 : vector<1x1x128xf32> to vector<1x128xf32>
    %138 = vector.broadcast %137 : vector<1x128xf32> to vector<16x128xf32>
    %139 = arith.addf %135, %138 : vector<16x128xf32>
    %cst_60 = arith.constant 0.000000e+00 : f32
    %140 = vector.broadcast %cst_60 : f32 to vector<16x128xf32>
    %141 = arith.maximumf %139, %140 : vector<16x128xf32>
    %142 = arith.truncf %141 : vector<16x128xf32> to vector<16x128xbf16>
    %c0_61 = arith.constant 0 : index
    %c0_62 = arith.constant 0 : index
    %c0_63 = arith.constant 0 : index
    %143 = vector.load %arg13[%c0_61, %c0_62, %c0_63] : memref<1x128x128xbf16, #tpu.memory_space<vmem>>, vector<1x128x128xbf16>
    %144 = vector.shape_cast %143 : vector<1x128x128xbf16> to vector<128x128xbf16>
    %cst_64 = arith.constant dense<0.000000e+00> : vector<16x128xf32>
    %145 = tpu.matmul %142, %144, %cst_64 {dimension_numbers = #tpu.dot_dimension_numbers<[1], [0], [0], [1], [0, 0, 1, 1], [], []>} : vector<16x128xbf16>, vector<128x128xbf16>, vector<16x128xf32> -> vector<16x128xf32>
    %c0_65 = arith.constant 0 : index
    %c0_66 = arith.constant 0 : index
    %c0_67 = arith.constant 0 : index
    %146 = vector.load %arg14[%c0_65, %c0_66, %c0_67] : memref<1x1x128xf32, #tpu.memory_space<vmem>>, vector<1x1x128xf32>
    %147 = vector.shape_cast %146 : vector<1x1x128xf32> to vector<1x128xf32>
    %148 = vector.broadcast %147 : vector<1x128xf32> to vector<16x128xf32>
    %149 = arith.addf %145, %148 : vector<16x128xf32>
    %150 = arith.addf %103, %149 : vector<16x128xf32>
    %c0_68 = arith.constant 0 : index
    %c0_69 = arith.constant 0 : index
    %151 = vector.load %arg17[%c0_68, %c0_69] : memref<16x128xf32, #tpu.memory_space<vmem>>, vector<16x128xf32>
    tpu.vector_store %arg17[%c0_68, %c0_69], %150 {strides = array<i32>} : memref<16x128xf32, #tpu.memory_space<vmem>>, vector<16x128xf32>,
    return
  }
  func.func @transform_0(%arg0: i32, %arg1: i32) -> (i32, i32) {
    %c0_i32 = arith.constant 0 : i32
    %c0_i32_0 = arith.constant 0 : i32
    return %arg0, %c0_i32 : i32, i32
  }
  func.func @transform_1(%arg0: i32, %arg1: i32) -> (i32, i32, i32) {
    %c0_i32 = arith.constant 0 : i32
    %c0_i32_0 = arith.constant 0 : i32
    %c0_i32_1 = arith.constant 0 : i32
    return %arg1, %c0_i32, %c0_i32_0 : i32, i32, i32
  }
  func.func @transform_2(%arg0: i32, %arg1: i32) -> (i32, i32, i32) {
    %c0_i32 = arith.constant 0 : i32
    %c0_i32_0 = arith.constant 0 : i32
    %c0_i32_1 = arith.constant 0 : i32
    return %arg1, %c0_i32, %c0_i32_0 : i32, i32, i32
  }
  func.func @transform_3(%arg0: i32, %arg1: i32) -> (i32, i32, i32) {
    %c0_i32 = arith.constant 0 : i32
    %c0_i32_0 = arith.constant 0 : i32
    %c0_i32_1 = arith.constant 0 : i32
    return %arg1, %c0_i32, %c0_i32_0 : i32, i32, i32
  }
  func.func @transform_4(%arg0: i32, %arg1: i32) -> (i32, i32, i32) {
    %c0_i32 = arith.constant 0 : i32
    %c0_i32_0 = arith.constant 0 : i32
    %c0_i32_1 = arith.constant 0 : i32
    return %arg1, %c0_i32, %c0_i32_0 : i32, i32, i32
  }
  func.func @transform_5(%arg0: i32, %arg1: i32) -> (i32, i32, i32) {
    %c0_i32 = arith.constant 0 : i32
    %c0_i32_0 = arith.constant 0 : i32
    %c0_i32_1 = arith.constant 0 : i32
    return %arg1, %c0_i32, %c0_i32_0 : i32, i32, i32
  }
  func.func @transform_6(%arg0: i32, %arg1: i32) -> (i32, i32, i32) {
    %c0_i32 = arith.constant 0 : i32
    %c0_i32_0 = arith.constant 0 : i32
    %c0_i32_1 = arith.constant 0 : i32
    return %arg1, %c0_i32, %c0_i32_0 : i32, i32, i32
  }
  func.func @transform_7(%arg0: i32, %arg1: i32) -> (i32, i32, i32) {
    %c0_i32 = arith.constant 0 : i32
    %c0_i32_0 = arith.constant 0 : i32
    %c0_i32_1 = arith.constant 0 : i32
    return %arg1, %c0_i32, %c0_i32_0 : i32, i32, i32
  }
  func.func @transform_8(%arg0: i32, %arg1: i32) -> (i32, i32, i32) {
    %c0_i32 = arith.constant 0 : i32
    %c0_i32_0 = arith.constant 0 : i32
    %c0_i32_1 = arith.constant 0 : i32
    return %arg1, %c0_i32, %c0_i32_0 : i32, i32, i32
  }
  func.func @transform_9(%arg0: i32, %arg1: i32) -> (i32, i32, i32) {
    %c0_i32 = arith.constant 0 : i32
    %c0_i32_0 = arith.constant 0 : i32
    %c0_i32_1 = arith.constant 0 : i32
    return %arg1, %c0_i32, %c0_i32_0 : i32, i32, i32
  }
  func.func @transform_10(%arg0: i32, %arg1: i32) -> (i32, i32, i32) {
    %c0_i32 = arith.constant 0 : i32
    %c0_i32_0 = arith.constant 0 : i32
    %c0_i32_1 = arith.constant 0 : i32
    return %arg1, %c0_i32, %c0_i32_0 : i32, i32, i32
  }
  func.func @transform_11(%arg0: i32, %arg1: i32) -> (i32, i32, i32) {
    %c0_i32 = arith.constant 0 : i32
    %c0_i32_0 = arith.constant 0 : i32
    %c0_i32_1 = arith.constant 0 : i32
    return %arg1, %c0_i32, %c0_i32_0 : i32, i32, i32
  }
  func.func @transform_12(%arg0: i32, %arg1: i32) -> (i32, i32, i32) {
    %c0_i32 = arith.constant 0 : i32
    %c0_i32_0 = arith.constant 0 : i32
    %c0_i32_1 = arith.constant 0 : i32
    return %arg1, %c0_i32, %c0_i32_0 : i32, i32, i32
  }
  func.func @transform_13(%arg0: i32, %arg1: i32) -> (i32, i32) {
    %c0_i32 = arith.constant 0 : i32
    %c0_i32_0 = arith.constant 0 : i32
    %c0_i32_1 = arith.constant 0 : i32
    return %c0_i32, %c0_i32_0 : i32, i32
  }
  func.func @transform_14(%arg0: i32, %arg1: i32) -> (i32, i32) {
    %c0_i32 = arith.constant 0 : i32
    %c0_i32_0 = arith.constant 0 : i32
    %c0_i32_1 = arith.constant 0 : i32
    return %c0_i32, %c0_i32_0 : i32, i32
  }
  func.func @transform_15(%arg0: i32, %arg1: i32) -> (i32, i32) {
    %c0_i32 = arith.constant 0 : i32
    %c0_i32_0 = arith.constant 0 : i32
    return %arg0, %c0_i32 : i32, i32
  }
}

</mosaic_0001>

<llo_original>
// kernel: transformer_encoder_forward.1
$region0: #{transformer_encoder_forward.1}
  #allocation0 [shape = 'u32[]', space=smem, size = 0x4, offset = 0x4, fixed_abs, tag = 'smem constant byte address 0x4 - core index']
  #allocation1 [shape = 'u32[144,128]{1,0:T(1,128)}', space=vmem, size = 0x12000, scoped, tag = 'internal scratch']
  %s0 = inlined_call_operand.vmem [shape: f32[16,128], index: 0, kind: input, shape index: {}, may-alias: {0,15}]
  %s1 = inlined_call_operand.vmem [shape: f32[2,1,128], index: 1, kind: input, shape index: {}]
  %s2 = inlined_call_operand.vmem [shape: f32[2,1,128], index: 2, kind: input, shape index: {}]
  %s3 = inlined_call_operand.hbm [shape: bf16[2,128,384], index: 3, kind: input, shape index: {}]
  %s4 = inlined_call_operand.vmem [shape: f32[2,1,384], index: 4, kind: input, shape index: {}]
  %s5 = inlined_call_operand.hbm [shape: bf16[2,128,128], index: 5, kind: input, shape index: {}]
  %s6 = inlined_call_operand.vmem [shape: f32[2,1,128], index: 6, kind: input, shape index: {}]
  %s7 = inlined_call_operand.vmem [shape: f32[2,1,128], index: 7, kind: input, shape index: {}]
  %s8 = inlined_call_operand.vmem [shape: f32[2,1,128], index: 8, kind: input, shape index: {}]
  %s9 = inlined_call_operand.hbm [shape: bf16[2,128,128], index: 9, kind: input, shape index: {}]
  %s10 = inlined_call_operand.vmem [shape: f32[2,1,128], index: 10, kind: input, shape index: {}]
  %s11 = inlined_call_operand.hbm [shape: bf16[2,128,128], index: 11, kind: input, shape index: {}]
  %s12 = inlined_call_operand.vmem [shape: f32[2,1,128], index: 12, kind: input, shape index: {}]
  %s13 = inlined_call_operand.hbm [shape: f32[128,128], index: 13, kind: input, shape index: {}]
  %s14 = inlined_call_operand.vmem [shape: bf16[128,128], index: 14, kind: input, shape index: {}]
  %s15 = inlined_call_operand.vmem [shape: f32[16,128], index: 15, kind: output, shape index: {}, may-alias: {0,15}]
  %s16 = sld [smem:[#allocation0]]
  $region117: #{transformer_encoder_forward.1} parent=0
    _
  %s18 = ssub.s32 1, %s16
  %s19 = scalar_select 0, %s18, %s16
  $region1: #{transformer_encoder_forward.1} parent=0
    #allocation2 [shape = 'u8[196608]{0}', space=vmem, size = 0x30000, scoped, tag = 'input window, operand 3']
    #allocation3 [shape = 's32[2]{0}', space=sflag, size = 0x8, scoped, tag = 'scoped memory for transformer_encoder_forward.1']
    #allocation4 [shape = 'u8[65536]{0}', space=vmem, size = 0x10000, scoped, tag = 'input window, operand 5']
    #allocation5 [shape = 's32[2]{0}', space=sflag, size = 0x8, scoped, tag = 'scoped memory for transformer_encoder_forward.1']
    #allocation6 [shape = 'u8[65536]{0}', space=vmem, size = 0x10000, scoped, tag = 'input window, operand 9']
    #allocation7 [shape = 'u8[65536]{0}', space=vmem, size = 0x10000, scoped, tag = 'input window, operand 11']
    #allocation8 [shape = 's32[2]{0}', space=sflag, size = 0x8, scoped, tag = 'scoped memory for transformer_encoder_forward.1']
    #allocation9 [shape = 'u8[65536]{0}', space=vmem, size = 0x10000, scoped, tag = 'input window, operand 13, single buffered']
    %20 = vsyncpa [#allocation3], 0
    %s21 = scalar_lea.sflag [#allocation3], 1
    %22 = vsyncpa %s21, 0
    %23 = vsyncpa [#allocation5], 0
    %s24 = scalar_lea.sflag [#allocation5], 1
    %25 = vsyncpa %s24, 0
    %26 = vsyncpa [#allocation8], 0
    %s27 = scalar_lea.sflag [#allocation8], 1
    %28 = vsyncpa %s27, 0
    loop: start=0, step=1, limit=4
    $region2: #{transformer_encoder_forward.1} parent=1 // loop_pre_header
      _
    $region3: #{transformer_encoder_forward.1} parent=1 // loop_header
      %s30 = sphi 0, %s34
      %p31 = scmp.ge.s32.totalorder %s30, 4
      %s37 = sphi 0, %s49
      %s38 = sphi 0, %s45
      %s39 = sphi 0, %s37
      %s40 = sphi 0, %s38
      %s41 = sphi 0, %s39
      %s42 = sphi 0, %s40
      %s52 = sphi 0, %s54
      %s55 = sphi 0, %s52
      %s56 = sphi 0, %s55
      %s72 = sphi 0, %s56
      %s78 = sphi 0, %s80
      %s81 = sphi 0, %s78
      %s82 = sphi 0, %s81
      %s98 = sphi 0, %s82
      %s104 = sphi 0, %s106
      %s107 = sphi 0, %s104
      %s108 = sphi 0, %s107
      %s124 = sphi 0, %s108
      %s130 = sphi 0, %s132
      %s133 = sphi 0, %s130
      %s134 = sphi 0, %s133
      %s150 = sphi 0, %s134
      %s156 = sphi 0, %s158
      %s159 = sphi 0, %s156
      %s160 = sphi 0, %s159
      %s176 = sphi 0, %s160
      %s182 = sphi 0, %s184
      %s185 = sphi 0, %s182
      %s186 = sphi 0, %s185
      %s202 = sphi 0, %s186
      %s208 = sphi 0, %s210
      %s211 = sphi 0, %s208
      %s212 = sphi 0, %s211
      %s228 = sphi 0, %s212
      %s234 = sphi 0, %s236
      %s237 = sphi 0, %s234
      %s238 = sphi 0, %s237
      %s254 = sphi 0, %s238
      %s260 = sphi 0, %s262
      %s263 = sphi 0, %s260
      %s264 = sphi 0, %s263
      %s280 = sphi 0, %s264
      %s286 = sphi 0, %s288
      %s289 = sphi 0, %s286
      %s290 = sphi 0, %s289
      %s306 = sphi 0, %s290
      %s312 = sphi 0, %s314
      %s315 = sphi 0, %s312
      %s316 = sphi 0, %s315
      %s332 = sphi 0, %s316
      %s338 = sphi 0, %s340
      %s341 = sphi 0, %s338
      %s342 = sphi 0, %s341
      %s358 = sphi 0, %s342
      %s364 = sphi 0, %s366
      %s367 = sphi 0, %s364
      %s368 = sphi 0, %s367
      %s384 = sphi 0, %s368
      %s388 = sphi 0, %s388
      %s390 = sphi 0, %s388
      %s391 = sphi 0, %s390
      %s405 = sphi 0, %s391
      %s409 = sphi 0, %s409
      %s411 = sphi 0, %s409
      %s412 = sphi 0, %s411
      %s426 = sphi 0, %s412
      %s432 = sphi 0, %s434
      %s435 = sphi 0, %s432
      %s436 = sphi 0, %s435
      %s452 = sphi 0, %s436
    $region4: #{transformer_encoder_forward.1} parent=1 // loop_header_branch
      %33 = sbr.rel (%p31) target = $region8
    $region5: #{transformer_encoder_forward.1} parent=1 // loop_body
      %s35 = ssub.s32 %s30, 1
      %s36 = ssub.s32 %s30, 2
      %s43 = sadd.s32 1, %s38
      %p44 = scmp.ge.s32.totalorder %s43, 2
      %s45 = scalar_select %p44, 0, %s43
      %s46 = sadd.s32 1, %s37
      %s47 = scalar_select %p44, %s46, %s37
      %p48 = scmp.ge.s32.totalorder %s47, 1
      %s49 = scalar_select %p48, 0, %s47
      %s50 = ssub.s32 %s37, %s49
      %p51 = scmp.eq.s32.totalorder %s50, 0
      %s53 = sadd.s32 %s52, 1
      %s54 = scalar_select %p51, %s52, %s53
      %p57 = pneg %p51
      %p58 = scmp.eq.s32.totalorder %s30, 1
      %p59 = por %p57, %p58
      %p60 = scmp.ne.s32.totalorder %s52, %s55
      %p61 = scmp.eq.s32.totalorder %s30, 0
      %p62 = por %p60, %p61
      %p63 = scmp.ne.s32.totalorder %s52, %s55
      %p64 = scmp.eq.s32.totalorder %s35, 1
      %p65 = por %p63, %p64
      %p66 = scmp.ne.s32.totalorder %s55, %s56
      %p67 = scmp.eq.s32.totalorder %s35, 0
      %p68 = por %p66, %p67
      %p69 = scmp.ne.s32.totalorder %s55, %s56
      %p70 = scmp.eq.s32.totalorder %s36, 1
      %p71 = por %p69, %p70
      %p73 = scmp.ne.s32.totalorder %s56, %s72
      %p74 = scmp.eq.s32.totalorder %s36, 0
      %p75 = por %p73, %p74
      %s76 = ssub.s32 %s38, %s45
      %p77 = scmp.eq.s32.totalorder %s76, 0
      %s79 = sadd.s32 %s78, 1
      %s80 = scalar_select %p77, %s78, %s79
      %p83 = pneg %p77
      %p84 = scmp.eq.s32.totalorder %s30, 1
      %p85 = por %p83, %p84
      %p86 = scmp.ne.s32.totalorder %s78, %s81
      %p87 = scmp.eq.s32.totalorder %s30, 0
      %p88 = por %p86, %p87
      %p89 = scmp.ne.s32.totalorder %s78, %s81
      %p90 = scmp.eq.s32.totalorder %s35, 1
      %p91 = por %p89, %p90
      %p92 = scmp.ne.s32.totalorder %s81, %s82
      %p93 = scmp.eq.s32.totalorder %s35, 0
      %p94 = por %p92, %p93
      %p95 = scmp.ne.s32.totalorder %s81, %s82
      %p96 = scmp.eq.s32.totalorder %s36, 1
      %p97 = por %p95, %p96
      %p99 = scmp.ne.s32.totalorder %s82, %s98
      %p100 = scmp.eq.s32.totalorder %s36, 0
      %p101 = por %p99, %p100
      %s102 = ssub.s32 %s38, %s45
      %p103 = scmp.eq.s32.totalorder %s102, 0
      %s105 = sadd.s32 %s104, 1
      %s106 = scalar_select %p103, %s104, %s105
      %p109 = pneg %p103
      %p110 = scmp.eq.s32.totalorder %s30, 1
      %p111 = por %p109, %p110
      %p112 = scmp.ne.s32.totalorder %s104, %s107
      %p113 = scmp.eq.s32.totalorder %s30, 0
      %p114 = por %p112, %p113
      %p115 = scmp.ne.s32.totalorder %s104, %s107
      %p116 = scmp.eq.s32.totalorder %s35, 1
      %p117 = por %p115, %p116
      %p118 = scmp.ne.s32.totalorder %s107, %s108
      %p119 = scmp.eq.s32.totalorder %s35, 0
      %p120 = por %p118, %p119
      %p121 = scmp.ne.s32.totalorder %s107, %s108
      %p122 = scmp.eq.s32.totalorder %s36, 1
      %p123 = por %p121, %p122
      %p125 = scmp.ne.s32.totalorder %s108, %s124
      %p126 = scmp.eq.s32.totalorder %s36, 0
      %p127 = por %p125, %p126
      %s128 = ssub.s32 %s38, %s45
      %p129 = scmp.eq.s32.totalorder %s128, 0
      %s131 = sadd.s32 %s130, 1
      %s132 = scalar_select %p129, %s130, %s131
      %p135 = pneg %p129
      %p136 = scmp.eq.s32.totalorder %s30, 1
      %p137 = por %p135, %p136
      %p138 = scmp.ne.s32.totalorder %s130, %s133
      %p139 = scmp.eq.s32.totalorder %s30, 0
      %p140 = por %p138, %p139
      %p141 = scmp.ne.s32.totalorder %s130, %s133
      %p142 = scmp.eq.s32.totalorder %s35, 1
      %p143 = por %p141, %p142
      %p144 = scmp.ne.s32.totalorder %s133, %s134
      %p145 = scmp.eq.s32.totalorder %s35, 0
      %p146 = por %p144, %p145
      %p147 = scmp.ne.s32.totalorder %s133, %s134
      %p148 = scmp.eq.s32.totalorder %s36, 1
      %p149 = por %p147, %p148
      %p151 = scmp.ne.s32.totalorder %s134, %s150
      %p152 = scmp.eq.s32.totalorder %s36, 0
      %p153 = por %p151, %p152
      %s154 = ssub.s32 %s38, %s45
      %p155 = scmp.eq.s32.totalorder %s154, 0
      %s157 = sadd.s32 %s156, 1
      %s158 = scalar_select %p155, %s156, %s157
      %p161 = pneg %p155
      %p162 = scmp.eq.s32.totalorder %s30, 1
      %p163 = por %p161, %p162
      %p164 = scmp.ne.s32.totalorder %s156, %s159
      %p165 = scmp.eq.s32.totalorder %s30, 0
      %p166 = por %p164, %p165
      %p167 = scmp.ne.s32.totalorder %s156, %s159
      %p168 = scmp.eq.s32.totalorder %s35, 1
      %p169 = por %p167, %p168
      %p170 = scmp.ne.s32.totalorder %s159, %s160
      %p171 = scmp.eq.s32.totalorder %s35, 0
      %p172 = por %p170, %p171
      %p173 = scmp.ne.s32.totalorder %s159, %s160
      %p174 = scmp.eq.s32.totalorder %s36, 1
      %p175 = por %p173, %p174
      %p177 = scmp.ne.s32.totalorder %s160, %s176
      %p178 = scmp.eq.s32.totalorder %s36, 0
      %p179 = por %p177, %p178
      %s180 = ssub.s32 %s38, %s45
      %p181 = scmp.eq.s32.totalorder %s180, 0
      %s183 = sadd.s32 %s182, 1
      %s184 = scalar_select %p181, %s182, %s183
      %p187 = pneg %p181
      %p188 = scmp.eq.s32.totalorder %s30, 1
      %p189 = por %p187, %p188
      %p190 = scmp.ne.s32.totalorder %s182, %s185
      %p191 = scmp.eq.s32.totalorder %s30, 0
      %p192 = por %p190, %p191
      %p193 = scmp.ne.s32.totalorder %s182, %s185
      %p194 = scmp.eq.s32.totalorder %s35, 1
      %p195 = por %p193, %p194
      %p196 = scmp.ne.s32.totalorder %s185, %s186
      %p197 = scmp.eq.s32.totalorder %s35, 0
      %p198 = por %p196, %p197
      %p199 = scmp.ne.s32.totalorder %s185, %s186
      %p200 = scmp.eq.s32.totalorder %s36, 1
      %p201 = por %p199, %p200
      %p203 = scmp.ne.s32.totalorder %s186, %s202
      %p204 = scmp.eq.s32.totalorder %s36, 0
      %p205 = por %p203, %p204
      %s206 = ssub.s32 %s38, %s45
      %p207 = scmp.eq.s32.totalorder %s206, 0
      %s209 = sadd.s32 %s208, 1
      %s210 = scalar_select %p207, %s208, %s209
      %p213 = pneg %p207
      %p214 = scmp.eq.s32.totalorder %s30, 1
      %p215 = por %p213, %p214
      %p216 = scmp.ne.s32.totalorder %s208, %s211
      %p217 = scmp.eq.s32.totalorder %s30, 0
      %p218 = por %p216, %p217
      %p219 = scmp.ne.s32.totalorder %s208, %s211
      %p220 = scmp.eq.s32.totalorder %s35, 1
      %p221 = por %p219, %p220
      %p222 = scmp.ne.s32.totalorder %s211, %s212
      %p223 = scmp.eq.s32.totalorder %s35, 0
      %p224 = por %p222, %p223
      %p225 = scmp.ne.s32.totalorder %s211, %s212
      %p226 = scmp.eq.s32.totalorder %s36, 1
      %p227 = por %p225, %p226
      %p229 = scmp.ne.s32.totalorder %s212, %s228
      %p230 = scmp.eq.s32.totalorder %s36, 0
      %p231 = por %p229, %p230
      %s232 = ssub.s32 %s38, %s45
      %p233 = scmp.eq.s32.totalorder %s232, 0
      %s235 = sadd.s32 %s234, 1
      %s236 = scalar_select %p233, %s234, %s235
      %p239 = pneg %p233
      %p240 = scmp.eq.s32.totalorder %s30, 1
      %p241 = por %p239, %p240
      %p242 = scmp.ne.s32.totalorder %s234, %s237
      %p243 = scmp.eq.s32.totalorder %s30, 0
      %p244 = por %p242, %p243
      %p245 = scmp.ne.s32.totalorder %s234, %s237
      %p246 = scmp.eq.s32.totalorder %s35, 1
      %p247 = por %p245, %p246
      %p248 = scmp.ne.s32.totalorder %s237, %s238
      %p249 = scmp.eq.s32.totalorder %s35, 0
      %p250 = por %p248, %p249
      %p251 = scmp.ne.s32.totalorder %s237, %s238
      %p252 = scmp.eq.s32.totalorder %s36, 1
      %p253 = por %p251, %p252
      %p255 = scmp.ne.s32.totalorder %s238, %s254
      %p256 = scmp.eq.s32.totalorder %s36, 0
      %p257 = por %p255, %p256
      %s258 = ssub.s32 %s38, %s45
      %p259 = scmp.eq.s32.totalorder %s258, 0
      %s261 = sadd.s32 %s260, 1
      %s262 = scalar_select %p259, %s260, %s261
      %p265 = pneg %p259
      %p266 = scmp.eq.s32.totalorder %s30, 1
      %p267 = por %p265, %p266
      %p268 = scmp.ne.s32.totalorder %s260, %s263
      %p269 = scmp.eq.s32.totalorder %s30, 0
      %p270 = por %p268, %p269
      %p271 = scmp.ne.s32.totalorder %s260, %s263
      %p272 = scmp.eq.s32.totalorder %s35, 1
      %p273 = por %p271, %p272
      %p274 = scmp.ne.s32.totalorder %s263, %s264
      %p275 = scmp.eq.s32.totalorder %s35, 0
      %p276 = por %p274, %p275
      %p277 = scmp.ne.s32.totalorder %s263, %s264
      %p278 = scmp.eq.s32.totalorder %s36, 1
      %p279 = por %p277, %p278
      %p281 = scmp.ne.s32.totalorder %s264, %s280
      %p282 = scmp.eq.s32.totalorder %s36, 0
      %p283 = por %p281, %p282
      %s284 = ssub.s32 %s38, %s45
      %p285 = scmp.eq.s32.totalorder %s284, 0
      %s287 = sadd.s32 %s286, 1
      %s288 = scalar_select %p285, %s286, %s287
      %p291 = pneg %p285
      %p292 = scmp.eq.s32.totalorder %s30, 1
      %p293 = por %p291, %p292
      %p294 = scmp.ne.s32.totalorder %s286, %s289
      %p295 = scmp.eq.s32.totalorder %s30, 0
      %p296 = por %p294, %p295
      %p297 = scmp.ne.s32.totalorder %s286, %s289
      %p298 = scmp.eq.s32.totalorder %s35, 1
      %p299 = por %p297, %p298
      %p300 = scmp.ne.s32.totalorder %s289, %s290
      %p301 = scmp.eq.s32.totalorder %s35, 0
      %p302 = por %p300, %p301
      %p303 = scmp.ne.s32.totalorder %s289, %s290
      %p304 = scmp.eq.s32.totalorder %s36, 1
      %p305 = por %p303, %p304
      %p307 = scmp.ne.s32.totalorder %s290, %s306
      %p308 = scmp.eq.s32.totalorder %s36, 0
      %p309 = por %p307, %p308
      %s310 = ssub.s32 %s38, %s45
      %p311 = scmp.eq.s32.totalorder %s310, 0
      %s313 = sadd.s32 %s312, 1
      %s314 = scalar_select %p311, %s312, %s313
      %p317 = pneg %p311
      %p318 = scmp.eq.s32.totalorder %s30, 1
      %p319 = por %p317, %p318
      %p320 = scmp.ne.s32.totalorder %s312, %s315
      %p321 = scmp.eq.s32.totalorder %s30, 0
      %p322 = por %p320, %p321
      %p323 = scmp.ne.s32.totalorder %s312, %s315
      %p324 = scmp.eq.s32.totalorder %s35, 1
      %p325 = por %p323, %p324
      %p326 = scmp.ne.s32.totalorder %s315, %s316
      %p327 = scmp.eq.s32.totalorder %s35, 0
      %p328 = por %p326, %p327
      %p329 = scmp.ne.s32.totalorder %s315, %s316
      %p330 = scmp.eq.s32.totalorder %s36, 1
      %p331 = por %p329, %p330
      %p333 = scmp.ne.s32.totalorder %s316, %s332
      %p334 = scmp.eq.s32.totalorder %s36, 0
      %p335 = por %p333, %p334
      %s336 = ssub.s32 %s38, %s45
      %p337 = scmp.eq.s32.totalorder %s336, 0
      %s339 = sadd.s32 %s338, 1
      %s340 = scalar_select %p337, %s338, %s339
      %p343 = pneg %p337
      %p344 = scmp.eq.s32.totalorder %s30, 1
      %p345 = por %p343, %p344
      %p346 = scmp.ne.s32.totalorder %s338, %s341
      %p347 = scmp.eq.s32.totalorder %s30, 0
      %p348 = por %p346, %p347
      %p349 = scmp.ne.s32.totalorder %s338, %s341
      %p350 = scmp.eq.s32.totalorder %s35, 1
      %p351 = por %p349, %p350
      %p352 = scmp.ne.s32.totalorder %s341, %s342
      %p353 = scmp.eq.s32.totalorder %s35, 0
      %p354 = por %p352, %p353
      %p355 = scmp.ne.s32.totalorder %s341, %s342
      %p356 = scmp.eq.s32.totalorder %s36, 1
      %p357 = por %p355, %p356
      %p359 = scmp.ne.s32.totalorder %s342, %s358
      %p360 = scmp.eq.s32.totalorder %s36, 0
      %p361 = por %p359, %p360
      %s362 = ssub.s32 %s38, %s45
      %p363 = scmp.eq.s32.totalorder %s362, 0
      %s365 = sadd.s32 %s364, 1
      %s366 = scalar_select %p363, %s364, %s365
      %p369 = pneg %p363
      %p370 = scmp.eq.s32.totalorder %s30, 1
      %p371 = por %p369, %p370
      %p372 = scmp.ne.s32.totalorder %s364, %s367
      %p373 = scmp.eq.s32.totalorder %s30, 0
      %p374 = por %p372, %p373
      %p375 = scmp.ne.s32.totalorder %s364, %s367
      %p376 = scmp.eq.s32.totalorder %s35, 1
      %p377 = por %p375, %p376
      %p378 = scmp.ne.s32.totalorder %s367, %s368
      %p379 = scmp.eq.s32.totalorder %s35, 0
      %p380 = por %p378, %p379
      %p381 = scmp.ne.s32.totalorder %s367, %s368
      %p382 = scmp.eq.s32.totalorder %s36, 1
      %p383 = por %p381, %p382
      %p385 = scmp.ne.s32.totalorder %s368, %s384
      %p386 = scmp.eq.s32.totalorder %s36, 0
      %p387 = por %p385, %p386
      %s389 = sadd.s32 %s388, 1
      %p392 = scmp.eq.s32.totalorder %s30, 1
      %p393 = scmp.ne.s32.totalorder %s388, %s390
      %p394 = scmp.eq.s32.totalorder %s30, 0
      %p395 = por %p393, %p394
      %p396 = scmp.ne.s32.totalorder %s388, %s390
      %p397 = scmp.eq.s32.totalorder %s35, 1
      %p398 = por %p396, %p397
      %p399 = scmp.ne.s32.totalorder %s390, %s391
      %p400 = scmp.eq.s32.totalorder %s35, 0
      %p401 = por %p399, %p400
      %p402 = scmp.ne.s32.totalorder %s390, %s391
      %p403 = scmp.eq.s32.totalorder %s36, 1
      %p404 = por %p402, %p403
      %p406 = scmp.ne.s32.totalorder %s391, %s405
      %p407 = scmp.eq.s32.totalorder %s36, 0
      %p408 = por %p406, %p407
      %s410 = sadd.s32 %s409, 1
      %p413 = scmp.eq.s32.totalorder %s30, 1
      %p414 = scmp.ne.s32.totalorder %s409, %s411
      %p415 = scmp.eq.s32.totalorder %s30, 0
      %p416 = por %p414, %p415
      %p417 = scmp.ne.s32.totalorder %s409, %s411
      %p418 = scmp.eq.s32.totalorder %s35, 1
      %p419 = por %p417, %p418
      %p420 = scmp.ne.s32.totalorder %s411, %s412
      %p421 = scmp.eq.s32.totalorder %s35, 0
      %p422 = por %p420, %p421
      %p423 = scmp.ne.s32.totalorder %s411, %s412
      %p424 = scmp.eq.s32.totalorder %s36, 1
      %p425 = por %p423, %p424
      %p427 = scmp.ne.s32.totalorder %s412, %s426
      %p428 = scmp.eq.s32.totalorder %s36, 0
      %p429 = por %p427, %p428
      %s430 = ssub.s32 %s37, %s49
      %p431 = scmp.eq.s32.totalorder %s430, 0
      %s433 = sadd.s32 %s432, 1
      %s434 = scalar_select %p431, %s432, %s433
      %p437 = pneg %p431
      %p438 = scmp.eq.s32.totalorder %s30, 1
      %p439 = por %p437, %p438
      %p440 = scmp.ne.s32.totalorder %s432, %s435
      %p441 = scmp.eq.s32.totalorder %s30, 0
      %p442 = por %p440, %p441
      %p443 = scmp.ne.s32.totalorder %s432, %s435
      %p444 = scmp.eq.s32.totalorder %s35, 1
      %p445 = por %p443, %p444
      %p446 = scmp.ne.s32.totalorder %s435, %s436
      %p447 = scmp.eq.s32.totalorder %s35, 0
      %p448 = por %p446, %p447
      %p449 = scmp.ne.s32.totalorder %s435, %s436
      %p450 = scmp.eq.s32.totalorder %s36, 1
      %p451 = por %p449, %p450
      %p453 = scmp.ne.s32.totalorder %s436, %s452
      %p454 = scmp.eq.s32.totalorder %s36, 0
      %p455 = por %p453, %p454
      %p456 = scmp.le.s32.totalorder 1, %s30
      %p457 = scmp.lt.s32.totalorder %s30, 3
      %p458 = pnand %p456, %p457
      %p459 = pneg %p458
      // Predicated region
      $region9: #{transformer_encoder_forward.1} parent=5 // pred_check
        _
      $region10: #{transformer_encoder_forward.1} parent=5 // pred_check_branch
        %461 = sbr.rel (%p458) target = $region12
      $region11: #{transformer_encoder_forward.1} parent=5 // pred_region
        %s462 = ssub.s32 %s30, 1
        // Predicated region
        $region13: #{transformer_encoder_forward.1} parent=11 // pred_check
          %p463 = pneg %p68
        $region14: #{transformer_encoder_forward.1} parent=11 // pred_check_branch
          %465 = sbr.rel (%p463) target = $region16
        $region15: #{transformer_encoder_forward.1} parent=11 // pred_region
          %s466 = smul.u32 2, %s39
          %p467 = scmp.lt.s32.totalorder %s466, 1
          %s468 = scalar_select %p467, %s466, 1
          %s469 = smul.addr %s468, 8
          %s470 = scalar_lea.vmem %s0, %s469
          %s471 = smul.u32 2, %s39
        $region16: #{transformer_encoder_forward.1} parent=11 // pred_fallthru
          _
        // Predicated region
        $region17: #{transformer_encoder_forward.1} parent=11 // pred_check
          %p472 = pneg %p401
        $region18: #{transformer_encoder_forward.1} parent=11 // pred_check_branch
          %474 = sbr.rel (%p472) target = $region20
        $region19: #{transformer_encoder_forward.1} parent=11 // pred_region
          %s476 = ssub.s32 2048, 2048
          %477 = vsyncadd [#allocation8], %s476
          %s478 = sshll.u32 [#allocation9], 4
          %s479 = int_to_ptr.vmem [resolvable:$true] %s478
          %484 = dma.hbm_to_vmem [thread:$0]  %s13, 2048, %s479, [#allocation8], 128, 128, 8
        $region20: #{transformer_encoder_forward.1} parent=11 // pred_fallthru
          _
        // Predicated region
        $region21: #{transformer_encoder_forward.1} parent=11 // pred_check
          %p485 = pneg %p422
        $region22: #{transformer_encoder_forward.1} parent=11 // pred_check_branch
          %487 = sbr.rel (%p485) target = $region24
        $region23: #{transformer_encoder_forward.1} parent=11 // pred_region
          _
        $region24: #{transformer_encoder_forward.1} parent=11 // pred_fallthru
          _
      $region12: #{transformer_encoder_forward.1} parent=5 // pred_fallthru
        _
      %p488 = scmp.lt.s32.totalorder %s30, 2
      // Predicated region
      $region25: #{transformer_encoder_forward.1} parent=5 // pred_check
        %p489 = pneg %p488
      $region26: #{transformer_encoder_forward.1} parent=5 // pred_check_branch
        %491 = sbr.rel (%p489) target = $region28
      $region27: #{transformer_encoder_forward.1} parent=5 // pred_region
        // Predicated region
        $region29: #{transformer_encoder_forward.1} parent=27 // pred_check
          %p492 = pneg %p88
        $region30: #{transformer_encoder_forward.1} parent=27 // pred_check_branch
          %494 = sbr.rel (%p492) target = $region32
        $region31: #{transformer_encoder_forward.1} parent=27 // pred_region
          %p495 = scmp.lt.s32.totalorder %s38, 1
          %s496 = scalar_select %p495, %s38, 1
          %s497 = scalar_lea.vmem %s1, %s496
        $region32: #{transformer_encoder_forward.1} parent=27 // pred_fallthru
          _
        // Predicated region
        $region33: #{transformer_encoder_forward.1} parent=27 // pred_check
          %p498 = pneg %p114
        $region34: #{transformer_encoder_forward.1} parent=27 // pred_check_branch
          %500 = sbr.rel (%p498) target = $region36
        $region35: #{transformer_encoder_forward.1} parent=27 // pred_region
          %p501 = scmp.lt.s32.totalorder %s38, 1
          %s502 = scalar_select %p501, %s38, 1
          %s503 = scalar_lea.vmem %s2, %s502
        $region36: #{transformer_encoder_forward.1} parent=27 // pred_fallthru
          _
        // Predicated region
        $region37: #{transformer_encoder_forward.1} parent=27 // pred_check
          %p504 = pneg %p140
        $region38: #{transformer_encoder_forward.1} parent=27 // pred_check_branch
          %506 = sbr.rel (%p504) target = $region40
        $region39: #{transformer_encoder_forward.1} parent=27 // pred_region
          %s507 = sand.u32 %s130, 1
          %s508 = scalar_lea.sflag [#allocation3], %s507
          %s509 = sand.u32 %s130, 1
          %s510 = smul.addr %s509, 192
          %s511 = scalar_lea.vmem [#allocation2], %s510
          %s513 = ssub.s32 3072, 3072
          %514 = vsyncadd %s508, %s513
          %s515 = smul.addr %s38, 48
          %s516 = smul.addr %s515, 64
          %s517 = scalar_lea.hbm %s3, %s516
          %s518 = sshll.u32 %s511, 4
          %s519 = int_to_ptr.vmem [resolvable:$true] %s518
          %524 = dma.hbm_to_vmem [thread:$0]  %s517, 3072, %s519, %s508, 192, 192, 12
        $region40: #{transformer_encoder_forward.1} parent=27 // pred_fallthru
          _
        // Predicated region
        $region41: #{transformer_encoder_forward.1} parent=27 // pred_check
          %p525 = pneg %p166
        $region42: #{transformer_encoder_forward.1} parent=27 // pred_check_branch
          %527 = sbr.rel (%p525) target = $region44
        $region43: #{transformer_encoder_forward.1} parent=27 // pred_region
          %p528 = scmp.lt.s32.totalorder %s38, 1
          %s529 = scalar_select %p528, %s38, 1
          %s530 = smul.addr %s529, 3
          %s531 = scalar_lea.vmem %s4, %s530
        $region44: #{transformer_encoder_forward.1} parent=27 // pred_fallthru
          _
        // Predicated region
        $region45: #{transformer_encoder_forward.1} parent=27 // pred_check
          %p532 = pneg %p192
        $region46: #{transformer_encoder_forward.1} parent=27 // pred_check_branch
          %534 = sbr.rel (%p532) target = $region48
        $region47: #{transformer_encoder_forward.1} parent=27 // pred_region
          %s535 = sand.u32 %s30, 1
          %s536 = scalar_lea.sflag [#allocation5], %s535
          %s537 = sand.u32 %s182, 1
          %s538 = smul.addr %s537, 64
          %s539 = scalar_lea.vmem [#allocation4], %s538
          %s541 = ssub.s32 1024, 1024
          %542 = vsyncadd %s536, %s541
          %s543 = smul.addr %s38, 16
          %s544 = smul.addr %s543, 64
          %s545 = scalar_lea.hbm %s5, %s544
          %s546 = sshll.u32 %s539, 4
          %s547 = int_to_ptr.vmem [resolvable:$true] %s546
          %552 = dma.hbm_to_vmem [thread:$0]  %s545, 1024, %s547, %s536, 64, 64, 4
        $region48: #{transformer_encoder_forward.1} parent=27 // pred_fallthru
          _
        // Predicated region
        $region49: #{transformer_encoder_forward.1} parent=27 // pred_check
          %p553 = pneg %p218
        $region50: #{transformer_encoder_forward.1} parent=27 // pred_check_branch
          %555 = sbr.rel (%p553) target = $region52
        $region51: #{transformer_encoder_forward.1} parent=27 // pred_region
          %p556 = scmp.lt.s32.totalorder %s38, 1
          %s557 = scalar_select %p556, %s38, 1
          %s558 = scalar_lea.vmem %s6, %s557
        $region52: #{transformer_encoder_forward.1} parent=27 // pred_fallthru
          _
        // Predicated region
        $region53: #{transformer_encoder_forward.1} parent=27 // pred_check
          %p559 = pneg %p244
        $region54: #{transformer_encoder_forward.1} parent=27 // pred_check_branch
          %561 = sbr.rel (%p559) target = $region56
        $region55: #{transformer_encoder_forward.1} parent=27 // pred_region
          %p562 = scmp.lt.s32.totalorder %s38, 1
          %s563 = scalar_select %p562, %s38, 1
          %s564 = scalar_lea.vmem %s7, %s563
        $region56: #{transformer_encoder_forward.1} parent=27 // pred_fallthru
          _
        // Predicated region
        $region57: #{transformer_encoder_forward.1} parent=27 // pred_check
          %p565 = pneg %p270
        $region58: #{transformer_encoder_forward.1} parent=27 // pred_check_branch
          %567 = sbr.rel (%p565) target = $region60
        $region59: #{transformer_encoder_forward.1} parent=27 // pred_region
          %p568 = scmp.lt.s32.totalorder %s38, 1
          %s569 = scalar_select %p568, %s38, 1
          %s570 = scalar_lea.vmem %s8, %s569
        $region60: #{transformer_encoder_forward.1} parent=27 // pred_fallthru
          _
        // Predicated region
        $region61: #{transformer_encoder_forward.1} parent=27 // pred_check
          %p571 = pneg %p296
        $region62: #{transformer_encoder_forward.1} parent=27 // pred_check_branch
          %573 = sbr.rel (%p571) target = $region64
        $region63: #{transformer_encoder_forward.1} parent=27 // pred_region
          %s574 = sand.u32 %s30, 1
          %s575 = scalar_lea.sflag [#allocation5], %s574
          %s576 = sand.u32 %s286, 1
          %s577 = smul.addr %s576, 64
          %s578 = scalar_lea.vmem [#allocation6], %s577
          %s580 = ssub.s32 1024, 1024
          %581 = vsyncadd %s575, %s580
          %s582 = smul.addr %s38, 16
          %s583 = smul.addr %s582, 64
          %s584 = scalar_lea.hbm %s9, %s583
          %s585 = sshll.u32 %s578, 4
          %s586 = int_to_ptr.vmem [resolvable:$true] %s585
          %591 = dma.hbm_to_vmem [thread:$0]  %s584, 1024, %s586, %s575, 64, 64, 4
        $region64: #{transformer_encoder_forward.1} parent=27 // pred_fallthru
          _
        // Predicated region
        $region65: #{transformer_encoder_forward.1} parent=27 // pred_check
          %p592 = pneg %p322
        $region66: #{transformer_encoder_forward.1} parent=27 // pred_check_branch
          %594 = sbr.rel (%p592) target = $region68
        $region67: #{transformer_encoder_forward.1} parent=27 // pred_region
          %p595 = scmp.lt.s32.totalorder %s38, 1
          %s596 = scalar_select %p595, %s38, 1
          %s597 = scalar_lea.vmem %s10, %s596
        $region68: #{transformer_encoder_forward.1} parent=27 // pred_fallthru
          _
        // Predicated region
        $region69: #{transformer_encoder_forward.1} parent=27 // pred_check
          %p598 = pneg %p348
        $region70: #{transformer_encoder_forward.1} parent=27 // pred_check_branch
          %600 = sbr.rel (%p598) target = $region72
        $region71: #{transformer_encoder_forward.1} parent=27 // pred_region
          %s601 = sand.u32 %s30, 1
          %s602 = scalar_lea.sflag [#allocation8], %s601
          %s603 = sand.u32 %s338, 1
          %s604 = smul.addr %s603, 64
          %s605 = scalar_lea.vmem [#allocation7], %s604
          %s607 = ssub.s32 1024, 1024
          %608 = vsyncadd %s602, %s607
          %s609 = smul.addr %s38, 16
          %s610 = smul.addr %s609, 64
          %s611 = scalar_lea.hbm %s11, %s610
          %s612 = sshll.u32 %s605, 4
          %s613 = int_to_ptr.vmem [resolvable:$true] %s612
          %618 = dma.hbm_to_vmem [thread:$0]  %s611, 1024, %s613, %s602, 64, 64, 4
        $region72: #{transformer_encoder_forward.1} parent=27 // pred_fallthru
          _
        // Predicated region
        $region73: #{transformer_encoder_forward.1} parent=27 // pred_check
          %p619 = pneg %p374
        $region74: #{transformer_encoder_forward.1} parent=27 // pred_check_branch
          %621 = sbr.rel (%p619) target = $region76
        $region75: #{transformer_encoder_forward.1} parent=27 // pred_region
          %p622 = scmp.lt.s32.totalorder %s38, 1
          %s623 = scalar_select %p622, %s38, 1
          %s624 = scalar_lea.vmem %s12, %s623
        $region76: #{transformer_encoder_forward.1} parent=27 // pred_fallthru
          _
      $region28: #{transformer_encoder_forward.1} parent=5 // pred_fallthru
        _
      %p625 = scmp.le.s32.totalorder 1, %s30
      %p626 = scmp.lt.s32.totalorder %s30, 3
      %p627 = pnand %p625, %p626
      %p628 = pneg %p627
      // Predicated region
      $region77: #{transformer_encoder_forward.1} parent=5 // pred_check
        _
      $region78: #{transformer_encoder_forward.1} parent=5 // pred_check_branch
        %630 = sbr.rel (%p627) target = $region80
      $region79: #{transformer_encoder_forward.1} parent=5 // pred_region
        %s631 = ssub.s32 %s30, 1
        %s632 = sand.u32 %s133, 1
        %s633 = scalar_lea.sflag [#allocation3], %s632
        %s634 = sand.u32 %s133, 1
        %s635 = smul.addr %s634, 192
        %s636 = scalar_lea.vmem [#allocation2], %s635
        // Predicated region
        $region81: #{transformer_encoder_forward.1} parent=79 // pred_check
          %p637 = pneg %p146
        $region82: #{transformer_encoder_forward.1} parent=79 // pred_check_branch
          %639 = sbr.rel (%p637) target = $region84
        $region83: #{transformer_encoder_forward.1} parent=79 // pred_region
          %640 = dma.done %s633, 3072
        $region84: #{transformer_encoder_forward.1} parent=79 // pred_fallthru
          _
        %s641 = sand.u32 %s35, 1
        %s642 = scalar_lea.sflag [#allocation5], %s641
        %s643 = sand.u32 %s185, 1
        %s644 = smul.addr %s643, 64
        %s645 = scalar_lea.vmem [#allocation4], %s644
        // Predicated region
        $region85: #{transformer_encoder_forward.1} parent=79 // pred_check
          %p646 = pneg %p198
        $region86: #{transformer_encoder_forward.1} parent=79 // pred_check_branch
          %648 = sbr.rel (%p646) target = $region88
        $region87: #{transformer_encoder_forward.1} parent=79 // pred_region
          %649 = dma.done %s642, 1024
        $region88: #{transformer_encoder_forward.1} parent=79 // pred_fallthru
          _
        %s650 = sand.u32 %s35, 1
        %s651 = scalar_lea.sflag [#allocation5], %s650
        %s652 = sand.u32 %s289, 1
        %s653 = smul.addr %s652, 64
        %s654 = scalar_lea.vmem [#allocation6], %s653
        // Predicated region
        $region89: #{transformer_encoder_forward.1} parent=79 // pred_check
          %p655 = pneg %p302
        $region90: #{transformer_encoder_forward.1} parent=79 // pred_check_branch
          %657 = sbr.rel (%p655) target = $region92
        $region91: #{transformer_encoder_forward.1} parent=79 // pred_region
          %658 = dma.done %s651, 1024
        $region92: #{transformer_encoder_forward.1} parent=79 // pred_fallthru
          _
        %s659 = sand.u32 %s35, 1
        %s660 = scalar_lea.sflag [#allocation8], %s659
        %s661 = sand.u32 %s341, 1
        %s662 = smul.addr %s661, 64
        %s663 = scalar_lea.vmem [#allocation7], %s662
        // Predicated region
        $region93: #{transformer_encoder_forward.1} parent=79 // pred_check
          %p664 = pneg %p354
        $region94: #{transformer_encoder_forward.1} parent=79 // pred_check_branch
          %666 = sbr.rel (%p664) target = $region96
        $region95: #{transformer_encoder_forward.1} parent=79 // pred_region
          %667 = dma.done %s660, 1024
        $region96: #{transformer_encoder_forward.1} parent=79 // pred_fallthru
          _
        // Predicated region
        $region97: #{transformer_encoder_forward.1} parent=79 // pred_check
          %p668 = pneg %p401
        $region98: #{transformer_encoder_forward.1} parent=79 // pred_check_branch
          %670 = sbr.rel (%p668) target = $region100
        $region99: #{transformer_encoder_forward.1} parent=79 // pred_region
          %671 = dma.done [#allocation8], 2048
        $region100: #{transformer_encoder_forward.1} parent=79 // pred_fallthru
          _
        %s672 = smul.u32 2, %s39
        %p673 = scmp.lt.s32.totalorder %s672, 1
        %s674 = scalar_select %p673, %s672, 1
        %s675 = smul.addr %s674, 8
        %s676 = scalar_lea.vmem %s0, %s675
        %p677 = pneg %p68
        %p678 = pneg %p65
        %p679 = scmp.lt.s32.totalorder %s40, 1
        %s680 = scalar_select %p679, %s40, 1
        %s681 = scalar_lea.vmem %s1, %s680
        %p682 = pneg %p94
        %p683 = pneg %p91
        %p684 = scmp.lt.s32.totalorder %s40, 1
        %s685 = scalar_select %p684, %s40, 1
        %s686 = scalar_lea.vmem %s2, %s685
        %p687 = pneg %p120
        %p688 = pneg %p117
        %s689 = sand.u32 %s133, 1
        %s690 = scalar_lea.sflag [#allocation3], %s689
        %s691 = sand.u32 %s133, 1
        %s692 = smul.addr %s691, 192
        %s693 = scalar_lea.vmem [#allocation2], %s692
        %p694 = pneg %p146
        %p695 = pneg %p143
        %p696 = scmp.lt.s32.totalorder %s40, 1
        %s697 = scalar_select %p696, %s40, 1
        %s698 = smul.addr %s697, 3
        %s699 = scalar_lea.vmem %s4, %s698
        %p700 = pneg %p172
        %p701 = pneg %p169
        %s702 = sand.u32 %s35, 1
        %s703 = scalar_lea.sflag [#allocation5], %s702
        %s704 = sand.u32 %s185, 1
        %s705 = smul.addr %s704, 64
        %s706 = scalar_lea.vmem [#allocation4], %s705
        %p707 = pneg %p198
        %p708 = pneg %p195
        %p709 = scmp.lt.s32.totalorder %s40, 1
        %s710 = scalar_select %p709, %s40, 1
        %s711 = scalar_lea.vmem %s6, %s710
        %p712 = pneg %p224
        %p713 = pneg %p221
        %p714 = scmp.lt.s32.totalorder %s40, 1
        %s715 = scalar_select %p714, %s40, 1
        %s716 = scalar_lea.vmem %s7, %s715
        %p717 = pneg %p250
        %p718 = pneg %p247
        %p719 = scmp.lt.s32.totalorder %s40, 1
        %s720 = scalar_select %p719, %s40, 1
        %s721 = scalar_lea.vmem %s8, %s720
        %p722 = pneg %p276
        %p723 = pneg %p273
        %s724 = sand.u32 %s35, 1
        %s725 = scalar_lea.sflag [#allocation5], %s724
        %s726 = sand.u32 %s289, 1
        %s727 = smul.addr %s726, 64
        %s728 = scalar_lea.vmem [#allocation6], %s727
        %p729 = pneg %p302
        %p730 = pneg %p299
        %p731 = scmp.lt.s32.totalorder %s40, 1
        %s732 = scalar_select %p731, %s40, 1
        %s733 = scalar_lea.vmem %s10, %s732
        %p734 = pneg %p328
        %p735 = pneg %p325
        %s736 = sand.u32 %s35, 1
        %s737 = scalar_lea.sflag [#allocation8], %s736
        %s738 = sand.u32 %s341, 1
        %s739 = smul.addr %s738, 64
        %s740 = scalar_lea.vmem [#allocation7], %s739
        %p741 = pneg %p354
        %p742 = pneg %p351
        %p743 = scmp.lt.s32.totalorder %s40, 1
        %s744 = scalar_select %p743, %s40, 1
        %s745 = scalar_lea.vmem %s12, %s744
        %p746 = pneg %p380
        %p747 = pneg %p377
        %p748 = pneg %p401
        %p749 = pneg %p398
        %p750 = pneg %p422
        %p751 = pneg %p419
        %p752 = pneg %p448
        %p753 = pneg %p445
        %s754 = smul.u32 2, %s39
        %p755 = scmp.lt.s32.totalorder %s754, 1
        %s756 = scalar_select %p755, %s754, 1
        %s757 = smul.addr %s756, 8
        %s758 = scalar_lea.vmem %s15, %s757
        %s759 = smul.u32 2, %s39
        %p760 = scmp.lt.s32.totalorder %s759, 1
        %s761 = scalar_select %p760, %s759, 1
        %s762 = smul.addr %s761, 8
        %s763 = scalar_lea.vmem %s0, %s762
        %s764 = smul.u32 2, %s39
        %p765 = scmp.lt.s32.totalorder %s40, 1
        %s766 = scalar_select %p765, %s40, 1
        %s767 = scalar_lea.vmem %s1, %s766
        %p768 = scmp.lt.s32.totalorder %s40, 1
        %s769 = scalar_select %p768, %s40, 1
        %s770 = scalar_lea.vmem %s2, %s769
        %p771 = scmp.lt.s32.totalorder %s40, 1
        %s772 = scalar_select %p771, %s40, 1
        %s773 = smul.addr %s772, 3
        %s774 = scalar_lea.vmem %s4, %s773
        %p775 = scmp.lt.s32.totalorder %s40, 1
        %s776 = scalar_select %p775, %s40, 1
        %s777 = scalar_lea.vmem %s6, %s776
        %p778 = scmp.lt.s32.totalorder %s40, 1
        %s779 = scalar_select %p778, %s40, 1
        %s780 = scalar_lea.vmem %s7, %s779
        %p781 = scmp.lt.s32.totalorder %s40, 1
        %s782 = scalar_select %p781, %s40, 1
        %s783 = scalar_lea.vmem %s8, %s782
        %p784 = scmp.lt.s32.totalorder %s40, 1
        %s785 = scalar_select %p784, %s40, 1
        %s786 = scalar_lea.vmem %s10, %s785
        %p787 = scmp.lt.s32.totalorder %s40, 1
        %s788 = scalar_select %p787, %s40, 1
        %s789 = scalar_lea.vmem %s12, %s788
        %s790 = smul.u32 2, %s39
        %p791 = scmp.lt.s32.totalorder %s790, 1
        %s792 = scalar_select %p791, %s790, 1
        %s793 = smul.addr %s792, 8
        %s794 = scalar_lea.vmem %s15, %s793
        %s795 = smul.u32 2, %s39
        %p797 = scmp.eq.s32.totalorder %s40, 0
        // Predicated region
        $region101: #{transformer_encoder_forward.1} parent=79 // pred_check
          %p798 = pneg %p797
        $region102: #{transformer_encoder_forward.1} parent=79 // pred_check_branch
          %800 = sbr.rel (%p798) target = $region104
        $region103: #{transformer_encoder_forward.1} parent=79 // pred_region
          %v801 = vld [vmem:[%s763] sm:$0xff]
          %v802 = vld [vmem:[%s763 + $0x8] sm:$0xff]
          %803 = vst [vmem:[%s794] sm:$0xff] %v801
          %804 = vst [vmem:[%s794 + $0x8] sm:$0xff] %v802
        $region104: #{transformer_encoder_forward.1} parent=79 // pred_fallthru
          _
        %v805 = vld [vmem:[%s794] sm:$0xff]
        %v806 = vld [vmem:[%s794 + $0x8] sm:$0xff]
        %v807 = vld [vmem:[%s767] sm:$0x1]
        %v808 = vld [vmem:[%s770] sm:$0x1]
        %809 = vadd.xlane.f32.xlu0 %v805
        %v810 = vpop.xlane.xlu0 %809
        %811 = vadd.xlane.f32.xlu0 %v806
        %v812 = vpop.xlane.xlu0 %811
        %v813 = vmul.f32 %v810, 0.03125
        %v814 = vmul.f32 %v812, 0.03125
        %v815 = vmul.f32 %v805, %v805
        %v816 = vmul.f32 %v806, %v806
        %817 = vadd.xlane.f32.xlu0 %v815
        %v818 = vpop.xlane.xlu0 %817
        %819 = vadd.xlane.f32.xlu0 %v816
        %v820 = vpop.xlane.xlu0 %819
        %v821 = vmul.f32 %v818, 0.03125
        %v822 = vmul.f32 %v820, 0.03125
        %v823 = vmul.f32 %v813, %v813
        %v824 = vmul.f32 %v814, %v814
        %v825 = vsub.f32 %v821, %v823
        %v826 = vsub.f32 %v822, %v824
        %v827 = vmax.f32 %v825, 0.0
        %v828 = vmax.f32 %v826, 0.0
        %v829 = vsub.f32 %v805, %v813
        %v830 = vsub.f32 %v806, %v814
        %v831 = vadd.f32 %v827, 1e-05
        %v832 = vadd.f32 %v828, 1e-05
        %v833 = vrsqrt.pop %v831
        %v834 = vrsqrt.pop %v832
        %v835 = vmul.f32 %v829, %v833
        %v836 = vmul.f32 %v830, %v834
        %v838 = vlaneseq
        %v839 = vshrl.u32 %v838, 7
        %v840 = vsub.s32 0, %v839
        %v841 = vrot.slane %v807, %v840
        %v843 = vmul.f32 %v835, %v841
        %v844 = vmul.f32 %v836, %v841
        %v846 = vlaneseq
        %v847 = vshrl.u32 %v846, 7
        %v848 = vsub.s32 0, %v847
        %v849 = vrot.slane %v808, %v848
        %v851 = vadd.f32 %v843, %v849
        %v852 = vadd.f32 %v844, %v849
        %v853 = vpack.c.bf16 %v852, %v851
        %v854 = vld [vmem:[%s636] sm:$0xff]
        %v855 = vld [vmem:[%s636 + $0x8] sm:$0xf]
        %v856 = vld [vmem:[%s636 + $0xc] sm:$0xff]
        %v857 = vld [vmem:[%s636 + $0x14] sm:$0xf]
        %v858 = vld [vmem:[%s636 + $0x18] sm:$0xff]
        %v859 = vld [vmem:[%s636 + $0x20] sm:$0xf]
        %v860 = vld [vmem:[%s636 + $0x24] sm:$0xff]
        %v861 = vld [vmem:[%s636 + $0x2c] sm:$0xf]
        %v862 = vld [vmem:[%s636 + $0x30] sm:$0xff]
        %v863 = vld [vmem:[%s636 + $0x38] sm:$0xf]
        %v864 = vld [vmem:[%s636 + $0x3c] sm:$0xff]
        %v865 = vld [vmem:[%s636 + $0x44] sm:$0xf]
        %v866 = vld [vmem:[%s636 + $0x48] sm:$0xff]
        %v867 = vld [vmem:[%s636 + $0x50] sm:$0xf]
        %v868 = vld [vmem:[%s636 + $0x54] sm:$0xff]
        %v869 = vld [vmem:[%s636 + $0x5c] sm:$0xf]
        %v870 = vld [vmem:[%s636 + $0x60] sm:$0xff]
        %v871 = vld [vmem:[%s636 + $0x68] sm:$0xf]
        %v872 = vld [vmem:[%s636 + $0x6c] sm:$0xff]
        %v873 = vld [vmem:[%s636 + $0x74] sm:$0xf]
        %v874 = vld [vmem:[%s636 + $0x78] sm:$0xff]
        %v875 = vld [vmem:[%s636 + $0x80] sm:$0xf]
        %v876 = vld [vmem:[%s636 + $0x84] sm:$0xff]
        %v877 = vld [vmem:[%s636 + $0x8c] sm:$0xf]
        %v878 = vld [vmem:[%s636 + $0x90] sm:$0xff]
        %v879 = vld [vmem:[%s636 + $0x98] sm:$0xf]
        %v880 = vld [vmem:[%s636 + $0x9c] sm:$0xff]
        %v881 = vld [vmem:[%s636 + $0xa4] sm:$0xf]
        %v882 = vld [vmem:[%s636 + $0xa8] sm:$0xff]
        %v883 = vld [vmem:[%s636 + $0xb0] sm:$0xf]
        %v884 = vld [vmem:[%s636 + $0xb4] sm:$0xff]
        %v885 = vld [vmem:[%s636 + $0xbc] sm:$0xf]
        %v886 = vld [vmem:[%s774] sm:$0x7]
        %v888 = vlaneseq
        %v889 = vshrl.u32 %v888, 7
        %v890 = vsub.s32 0, %v889
        %v891 = vrot.slane %v886, %v890
        %v892 = vlaneseq
        %v893 = vshrl.u32 %v892, 7
        %v894 = vsub.s32 1, %v893
        %v895 = vrot.slane %v886, %v894
        %v896 = vlaneseq
        %v897 = vshrl.u32 %v896, 7
        %v898 = vsub.s32 2, %v897
        %v899 = vrot.slane %v886, %v898
        %v935 = vunpack.c.l.b16 %v854
        %v936 = vunpack.c.h.b16 %v854
        %v937 = vunpack.c.l.b16 %v855
        %v938 = vunpack.c.l.b16 %v856
        %v939 = vunpack.c.h.b16 %v856
        %v940 = vunpack.c.l.b16 %v857
        %v941 = vunpack.c.l.b16 %v858
        %v942 = vunpack.c.h.b16 %v858
        %v943 = vunpack.c.l.b16 %v859
        %v944 = vunpack.c.l.b16 %v860
        %v945 = vunpack.c.h.b16 %v860
        %v946 = vunpack.c.l.b16 %v861
        %v947 = vunpack.c.l.b16 %v862
        %v948 = vunpack.c.h.b16 %v862
        %v949 = vunpack.c.l.b16 %v863
        %v950 = vunpack.c.l.b16 %v864
        %v951 = vunpack.c.h.b16 %v864
        %v952 = vunpack.c.l.b16 %v865
        %v953 = vunpack.c.l.b16 %v866
        %v954 = vunpack.c.h.b16 %v866
        %v955 = vunpack.c.l.b16 %v867
        %v956 = vunpack.c.l.b16 %v868
        %v957 = vunpack.c.h.b16 %v868
        %v958 = vunpack.c.l.b16 %v869
        %v959 = vunpack.c.l.b16 %v870
        %v960 = vunpack.c.h.b16 %v870
        %v961 = vunpack.c.l.b16 %v871
        %v962 = vunpack.c.l.b16 %v872
        %v963 = vunpack.c.h.b16 %v872
        %v964 = vunpack.c.l.b16 %v873
        %v965 = vunpack.c.l.b16 %v874
        %v966 = vunpack.c.h.b16 %v874
        %v967 = vunpack.c.l.b16 %v875
        %v968 = vunpack.c.l.b16 %v876
        %v969 = vunpack.c.h.b16 %v876
        %v970 = vunpack.c.l.b16 %v877
        %v971 = vunpack.c.l.b16 %v878
        %v972 = vunpack.c.h.b16 %v878
        %v973 = vunpack.c.l.b16 %v879
        %v974 = vunpack.c.l.b16 %v880
        %v975 = vunpack.c.h.b16 %v880
        %v976 = vunpack.c.l.b16 %v881
        %v977 = vunpack.c.l.b16 %v882
        %v978 = vunpack.c.h.b16 %v882
        %v979 = vunpack.c.l.b16 %v883
        %v980 = vunpack.c.l.b16 %v884
        %v981 = vunpack.c.h.b16 %v884
        %v982 = vunpack.c.l.b16 %v885
        %v983 = vpack.c.b16 %v938, %v935
        %v984 = vpack.c.b16 %v939, %v936
        %v985 = vpack.c.b16 %v940, %v937
        %v986 = vpack.c.b16 %v944, %v941
        %v987 = vpack.c.b16 %v945, %v942
        %v988 = vpack.c.b16 %v946, %v943
        %v989 = vpack.c.b16 %v950, %v947
        %v990 = vpack.c.b16 %v951, %v948
        %v991 = vpack.c.b16 %v952, %v949
        %v992 = vpack.c.b16 %v956, %v953
        %v993 = vpack.c.b16 %v957, %v954
        %v994 = vpack.c.b16 %v958, %v955
        %v995 = vpack.c.b16 %v962, %v959
        %v996 = vpack.c.b16 %v963, %v960
        %v997 = vpack.c.b16 %v964, %v961
        %v998 = vpack.c.b16 %v968, %v965
        %v999 = vpack.c.b16 %v969, %v966
        %v1000 = vpack.c.b16 %v970, %v967
        %v1001 = vpack.c.b16 %v974, %v971
        %v1002 = vpack.c.b16 %v975, %v972
        %v1003 = vpack.c.b16 %v976, %v973
        %v1004 = vpack.c.b16 %v980, %v977
        %v1005 = vpack.c.b16 %v981, %v978
        %v1006 = vpack.c.b16 %v982, %v979
        %1031 = vmatprep.subr.bf16.mxu0 %v984
        %1032 = vmatpush1.bf16.msra.mxu0 %v983
        %1033 = vmatprep.subr.bf16.mxu0 %v987
        %1034 = vmatpush1.bf16.msra.mxu0 %v986
        %1035 = vmatprep.subr.bf16.mxu0 %v990
        %1036 = vmatpush1.bf16.msra.mxu0 %v989
        %1037 = vmatprep.subr.bf16.mxu0 %v993
        %1038 = vmatpush1.bf16.msra.mxu0 %v992
        %1039 = vmatprep.subr.bf16.mxu0 %v996
        %1040 = vmatpush1.bf16.msra.mxu0 %v995
        %1041 = vmatprep.subr.bf16.mxu0 %v999
        %1042 = vmatpush1.bf16.msra.mxu0 %v998
        %1043 = vmatprep.subr.bf16.mxu0 %v1002
        %1044 = vmatpush1.bf16.msra.mxu0 %v1001
        %1045 = vmatprep.subr.bf16.mxu0 %v1005
        %1046 = vmatpush1.bf16.msra.mxu0 %v1004
        %1047 = vmatprep.subr.bf16.mxu0 0
        %1048 = vmatpush1.bf16.msra.mxu0 0
        %1049 = vmatprep.subr.bf16.mxu0 0
        %1050 = vmatpush1.bf16.msra.mxu0 0
        %1051 = vmatprep.subr.bf16.mxu0 0
        %1052 = vmatpush1.bf16.msra.mxu0 0
        %1053 = vmatprep.subr.bf16.mxu0 0
        %1054 = vmatpush1.bf16.msra.mxu0 0
        %1055 = vmatprep.subr.bf16.mxu0 0
        %1056 = vmatpush1.bf16.msra.mxu0 0
        %1057 = vmatprep.subr.bf16.mxu0 0
        %1058 = vmatpush1.bf16.msra.mxu0 0
        %1059 = vmatprep.subr.bf16.mxu0 0
        %1060 = vmatpush1.bf16.msra.mxu0 0
        %1061 = vmatprep.subr.bf16.mxu0 0
        %1062 = vmatpush1.bf16.msra.mxu0 0
        %1063 = vmatprep.mubr.bf16.mxu0 0
        %1064 = vmatmul.mubr.bf16.gmra.mrb[0].mxu0 %v853
        %v1065 = vpop.f32.mrb[0].mxu0
        %v1066 = vadd.f32 %v891, %v1065
        %v1067 = vpop.f32.mrb[0].mxu0
        %v1068 = vadd.f32 %v895, %v1067
        %v1069 = vpop.f32.mrb[0].mxu0
        %v1070 = vadd.f32 %v891, %v1069
        %v1071 = vpop.f32.mrb[0].mxu0
        %v1072 = vadd.f32 %v895, %v1071
        %1073 = vdwg.mxu0
        %1074 = vmatprep.subr.bf16.mxu0 0
        %1075 = vmatpush1.bf16.msra.mxu0 %v985
        %1076 = vmatprep.subr.bf16.mxu0 0
        %1077 = vmatpush1.bf16.msra.mxu0 %v988
        %1078 = vmatprep.subr.bf16.mxu0 0
        %1079 = vmatpush1.bf16.msra.mxu0 %v991
        %1080 = vmatprep.subr.bf16.mxu0 0
        %1081 = vmatpush1.bf16.msra.mxu0 %v994
        %1082 = vmatprep.subr.bf16.mxu0 0
        %1083 = vmatpush1.bf16.msra.mxu0 %v997
        %1084 = vmatprep.subr.bf16.mxu0 0
        %1085 = vmatpush1.bf16.msra.mxu0 %v1000
        %1086 = vmatprep.subr.bf16.mxu0 0
        %1087 = vmatpush1.bf16.msra.mxu0 %v1003
        %1088 = vmatprep.subr.bf16.mxu0 0
        %1089 = vmatpush1.bf16.msra.mxu0 %v1006
        %1090 = vmatprep.subr.bf16.mxu0 0
        %1091 = vmatpush1.bf16.msra.mxu0 0
        %1092 = vmatprep.subr.bf16.mxu0 0
        %1093 = vmatpush1.bf16.msra.mxu0 0
        %1094 = vmatprep.subr.bf16.mxu0 0
        %1095 = vmatpush1.bf16.msra.mxu0 0
        %1096 = vmatprep.subr.bf16.mxu0 0
        %1097 = vmatpush1.bf16.msra.mxu0 0
        %1098 = vmatprep.subr.bf16.mxu0 0
        %1099 = vmatpush1.bf16.msra.mxu0 0
        %1100 = vmatprep.subr.bf16.mxu0 0
        %1101 = vmatpush1.bf16.msra.mxu0 0
        %1102 = vmatprep.subr.bf16.mxu0 0
        %1103 = vmatpush1.bf16.msra.mxu0 0
        %1104 = vmatprep.subr.bf16.mxu0 0
        %1105 = vmatpush1.bf16.msra.mxu0 0
        %1106 = vmatprep.mubr.bf16.mxu0 0
        %1107 = vmatmul.mubr.bf16.gmra.mrb[0].mxu0 %v853
        %v1108 = vpop.f32.mrb[0].mxu0
        %v1109 = vadd.f32 %v899, %v1108
        %v1110 = vpop.f32.mrb[0].mxu0
        %v1111 = vpop.f32.mrb[0].mxu0
        %v1112 = vadd.f32 %v899, %v1111
        %v1113 = vpop.f32.mrb[0].mxu0
        %1114 = vdwg.mxu0
        %v1115 = vld [vmem:[#allocation9] sm:$0xff]
        %v1116 = vld [vmem:[#allocation9 + $0x8] sm:$0xff]
        %v1117 = vld [vmem:[#allocation9 + $0x10] sm:$0xff]
        %v1118 = vld [vmem:[#allocation9 + $0x18] sm:$0xff]
        %v1119 = vld [vmem:[#allocation9 + $0x20] sm:$0xff]
        %v1120 = vld [vmem:[#allocation9 + $0x28] sm:$0xff]
        %v1121 = vld [vmem:[#allocation9 + $0x30] sm:$0xff]
        %v1122 = vld [vmem:[#allocation9 + $0x38] sm:$0xff]
        %v1123 = vld [vmem:[#allocation9 + $0x40] sm:$0xff]
        %v1124 = vld [vmem:[#allocation9 + $0x48] sm:$0xff]
        %v1125 = vld [vmem:[#allocation9 + $0x50] sm:$0xff]
        %v1126 = vld [vmem:[#allocation9 + $0x58] sm:$0xff]
        %v1127 = vld [vmem:[#allocation9 + $0x60] sm:$0xff]
        %v1128 = vld [vmem:[#allocation9 + $0x68] sm:$0xff]
        %v1129 = vld [vmem:[#allocation9 + $0x70] sm:$0xff]
        %v1130 = vld [vmem:[#allocation9 + $0x78] sm:$0xff]
        %1131 = vmax.xlane.f32.xlu0 %v1066
        %v1132 = vpop.xlane.xlu0 %1131
        %1133 = vmax.xlane.f32.xlu0 %v1070
        %v1134 = vpop.xlane.xlu0 %1133
        %v1135 = vsub.f32 %v1066, %v1132
        %v1136 = vsub.f32 %v1070, %v1134
        %v1137 = vmul.f32 %v1135, 1.442695
        %v1138 = vpow.pop %v1137
        %v1139 = vmul.f32 %v1136, 1.442695
        %v1140 = vpow.pop %v1139
        %v1141 = vpack.c.bf16 %v1140, %v1138
        %v1142 = vld [vmem:[%s14] sm:$0xf]
        %v1143 = vld [vmem:[%s14 + $0x4] sm:$0xf]
        %v1144 = vld [vmem:[%s14 + $0x8] sm:$0xf]
        %v1145 = vld [vmem:[%s14 + $0xc] sm:$0xf]
        %v1146 = vld [vmem:[%s14 + $0x10] sm:$0xf]
        %v1147 = vld [vmem:[%s14 + $0x14] sm:$0xf]
        %v1148 = vld [vmem:[%s14 + $0x18] sm:$0xf]
        %v1149 = vld [vmem:[%s14 + $0x1c] sm:$0xf]
        %v1150 = vld [vmem:[%s14 + $0x20] sm:$0xf]
        %v1151 = vld [vmem:[%s14 + $0x24] sm:$0xf]
        %v1152 = vld [vmem:[%s14 + $0x28] sm:$0xf]
        %v1153 = vld [vmem:[%s14 + $0x2c] sm:$0xf]
        %v1154 = vld [vmem:[%s14 + $0x30] sm:$0xf]
        %v1155 = vld [vmem:[%s14 + $0x34] sm:$0xf]
        %v1156 = vld [vmem:[%s14 + $0x38] sm:$0xf]
        %v1157 = vld [vmem:[%s14 + $0x3c] sm:$0xf]
        %v1174 = vunpack.c.l.b16 %v1142
        %v1175 = vunpack.c.l.b16 %v1143
        %v1176 = vunpack.c.l.b16 %v1144
        %v1177 = vunpack.c.l.b16 %v1145
        %v1178 = vunpack.c.l.b16 %v1146
        %v1179 = vunpack.c.l.b16 %v1147
        %v1180 = vunpack.c.l.b16 %v1148
        %v1181 = vunpack.c.l.b16 %v1149
        %v1182 = vunpack.c.l.b16 %v1150
        %v1183 = vunpack.c.l.b16 %v1151
        %v1184 = vunpack.c.l.b16 %v1152
        %v1185 = vunpack.c.l.b16 %v1153
        %v1186 = vunpack.c.l.b16 %v1154
        %v1187 = vunpack.c.l.b16 %v1155
        %v1188 = vunpack.c.l.b16 %v1156
        %v1189 = vunpack.c.l.b16 %v1157
        %v1190 = vpack.c.b16 %v1175, %v1174
        %v1191 = vpack.c.b16 %v1177, %v1176
        %v1192 = vpack.c.b16 %v1179, %v1178
        %v1193 = vpack.c.b16 %v1181, %v1180
        %v1194 = vpack.c.b16 %v1183, %v1182
        %v1195 = vpack.c.b16 %v1185, %v1184
        %v1196 = vpack.c.b16 %v1187, %v1186
        %v1197 = vpack.c.b16 %v1189, %v1188
        %1206 = vmatprep.subr.bf16.mxu0 0
        %1207 = vmatpush1.bf16.msra.mxu0 %v1190
        %1208 = vmatprep.subr.bf16.mxu0 0
        %1209 = vmatpush1.bf16.msra.mxu0 %v1191
        %1210 = vmatprep.subr.bf16.mxu0 0
        %1211 = vmatpush1.bf16.msra.mxu0 %v1192
        %1212 = vmatprep.subr.bf16.mxu0 0
        %1213 = vmatpush1.bf16.msra.mxu0 %v1193
        %1214 = vmatprep.subr.bf16.mxu0 0
        %1215 = vmatpush1.bf16.msra.mxu0 %v1194
        %1216 = vmatprep.subr.bf16.mxu0 0
        %1217 = vmatpush1.bf16.msra.mxu0 %v1195
        %1218 = vmatprep.subr.bf16.mxu0 0
        %1219 = vmatpush1.bf16.msra.mxu0 %v1196
        %1220 = vmatprep.subr.bf16.mxu0 0
        %1221 = vmatpush1.bf16.msra.mxu0 %v1197
        %1222 = vmatprep.subr.bf16.mxu0 0
        %1223 = vmatpush1.bf16.msra.mxu0 0
        %1224 = vmatprep.subr.bf16.mxu0 0
        %1225 = vmatpush1.bf16.msra.mxu0 0
        %1226 = vmatprep.subr.bf16.mxu0 0
        %1227 = vmatpush1.bf16.msra.mxu0 0
        %1228 = vmatprep.subr.bf16.mxu0 0
        %1229 = vmatpush1.bf16.msra.mxu0 0
        %1230 = vmatprep.subr.bf16.mxu0 0
        %1231 = vmatpush1.bf16.msra.mxu0 0
        %1232 = vmatprep.subr.bf16.mxu0 0
        %1233 = vmatpush1.bf16.msra.mxu0 0
        %1234 = vmatprep.subr.bf16.mxu0 0
        %1235 = vmatpush1.bf16.msra.mxu0 0
        %1236 = vmatprep.subr.bf16.mxu0 0
        %1237 = vmatpush1.bf16.msra.mxu0 0
        %1238 = vmatprep.mubr.bf16.mxu0 0
        %1239 = vmatmul.mubr.bf16.gmra.mrb[0].mxu0 %v1141
        %v1240 = vpop.f32.mrb[0].mxu0
        %v1241 = vadd.f32 0.0, %v1240
        %v1242 = vpop.f32.mrb[0].mxu0
        %v1243 = vpop.f32.mrb[0].mxu0
        %v1244 = vadd.f32 0.0, %v1243
        %v1245 = vpop.f32.mrb[0].mxu0
        %1246 = vdwg.mxu0
        %v1247 = vrcp.pop %v1241
        %v1248 = vrcp.pop %v1244
        %v1249 = vmul.f32 %v1138, %v1247
        %v1250 = vmul.f32 %v1140, %v1248
        %v1251 = vrot.slane %v1068, 4
        %v1252 = vmax.f32 %v1068, %v1251
        %v1253 = vrot.slane %v1252, 2
        %v1254 = vmax.f32 %v1252, %v1253
        %v1255 = vrot.slane %v1254, 1
        %v1256 = vmax.f32 %v1254, %v1255
        %v1257 = vsub.f32 %v1068, %v1256
        %v1258 = vmul.f32 %v1257, 1.442695
        %v1259 = vpow.pop %v1258
        %v1260 = vrot.slane %v1259, 4
        %v1261 = vadd.f32 %v1259, %v1260
        %v1262 = vrot.slane %v1261, 2
        %v1263 = vadd.f32 %v1261, %v1262
        %v1264 = vrot.slane %v1263, 1
        %v1265 = vadd.f32 %v1263, %v1264
        %v1266 = vrcp.pop %v1265
        %v1267 = vmul.f32 %v1259, %v1266
        %v1268 = vpack.c.bf16 %v1267, %v1267
        %v1269 = vpack.c.bf16 %v1109, %v1109
        %1270 = vxpose.xlu0.c.b16.start [1/8] %v1268, 128
        %1271 = vxpose.xlu0.c.b16.cont [2/8] 0, 128
        %1272 = vxpose.xlu0.c.b16.cont [3/8] 0, 128
        %1273 = vxpose.xlu0.c.b16.cont [4/8] 0, 128
        %1274 = vxpose.xlu0.c.b16.cont [5/8] 0, 128
        %1275 = vxpose.xlu0.c.b16.cont [6/8] 0, 128
        %1276 = vxpose.xlu0.c.b16.cont [7/8] 0, 128
        %1277 = vxpose.xlu0.c.b16.end [8/8] 0, 128
        %v1278 = vpop.trf.xlu0
        %v1279 = vpop.trf.xlu0
        %v1280 = vpop.trf.xlu0
        %v1281 = vpop.trf.xlu0
        %v1282 = vpop.trf.xlu0
        %v1283 = vpop.trf.xlu0
        %v1284 = vpop.trf.xlu0
        %v1285 = vpop.trf.xlu0
        %vm1286 = vcmask 64512
        %v1288 = vsel %vm1286, %v1278, 0
        %v1291 = vsel %vm1286, %v1279, 0
        %v1294 = vsel %vm1286, %v1280, 0
        %v1297 = vsel %vm1286, %v1281, 0
        %v1300 = vsel %vm1286, %v1282, 0
        %v1303 = vsel %vm1286, %v1283, 0
        %v1306 = vsel %vm1286, %v1284, 0
        %v1309 = vsel %vm1286, %v1285, 0
        %vm1311 = vcmask 1043456
        %v1313 = vsel %vm1311, %v1269, 0
        %1315 = vmatprep.subr.bf16.mxu0 0
        %1316 = vmatpush1.bf16.msra.mxu0 %v1313
        %1317 = vmatprep.subr.bf16.mxu0 0
        %1318 = vmatpush1.bf16.msra.mxu0 0
        %1319 = vmatprep.subr.bf16.mxu0 0
        %1320 = vmatpush1.bf16.msra.mxu0 0
        %1321 = vmatprep.subr.bf16.mxu0 0
        %1322 = vmatpush1.bf16.msra.mxu0 0
        %1323 = vmatprep.subr.bf16.mxu0 0
        %1324 = vmatpush1.bf16.msra.mxu0 0
        %1325 = vmatprep.subr.bf16.mxu0 0
        %1326 = vmatpush1.bf16.msra.mxu0 0
        %1327 = vmatprep.subr.bf16.mxu0 0
        %1328 = vmatpush1.bf16.msra.mxu0 0
        %1329 = vmatprep.subr.bf16.mxu0 0
        %1330 = vmatpush1.bf16.msra.mxu0 0
        %1331 = vmatprep.subr.bf16.mxu0 0
        %1332 = vmatpush1.bf16.msra.mxu0 0
        %1333 = vmatprep.subr.bf16.mxu0 0
        %1334 = vmatpush1.bf16.msra.mxu0 0
        %1335 = vmatprep.subr.bf16.mxu0 0
        %1336 = vmatpush1.bf16.msra.mxu0 0
        %1337 = vmatprep.subr.bf16.mxu0 0
        %1338 = vmatpush1.bf16.msra.mxu0 0
        %1339 = vmatprep.subr.bf16.mxu0 0
        %1340 = vmatpush1.bf16.msra.mxu0 0
        %1341 = vmatprep.subr.bf16.mxu0 0
        %1342 = vmatpush1.bf16.msra.mxu0 0
        %1343 = vmatprep.subr.bf16.mxu0 0
        %1344 = vmatpush1.bf16.msra.mxu0 0
        %1345 = vmatprep.subr.bf16.mxu0 0
        %1346 = vmatpush1.bf16.msra.mxu0 0
        %1347 = vmatprep.mubr.bf16.mxu0 0
        %1348 = vmatmul.mubr.bf16.gmra.mrb[0].mxu0 %v1288
        %v1349 = vpop.f32.mrb[0].mxu0
        %v1350 = vadd.f32 0.0, %v1349
        %v1351 = vpop.f32.mrb[0].mxu0
        %v1352 = vpop.f32.mrb[0].mxu0
        %v1353 = vadd.f32 0.0, %v1352
        %v1354 = vpop.f32.mrb[0].mxu0
        %1355 = vmatprep.mubr.bf16.mxu0 0
        %1356 = vmatmul.mubr.bf16.gmra.mrb[0].mxu0 %v1291
        %v1357 = vpop.f32.mrb[0].mxu0
        %v1358 = vadd.f32 0.0, %v1357
        %v1359 = vpop.f32.mrb[0].mxu0
        %v1360 = vpop.f32.mrb[0].mxu0
        %v1361 = vadd.f32 0.0, %v1360
        %v1362 = vpop.f32.mrb[0].mxu0
        %1363 = vmatprep.mubr.bf16.mxu0 0
        %1364 = vmatmul.mubr.bf16.gmra.mrb[0].mxu0 %v1294
        %v1365 = vpop.f32.mrb[0].mxu0
        %v1366 = vadd.f32 0.0, %v1365
        %v1367 = vpop.f32.mrb[0].mxu0
        %v1368 = vpop.f32.mrb[0].mxu0
        %v1369 = vadd.f32 0.0, %v1368
        %v1370 = vpop.f32.mrb[0].mxu0
        %1371 = vmatprep.mubr.bf16.mxu0 0
        %1372 = vmatmul.mubr.bf16.gmra.mrb[0].mxu0 %v1297
        %v1373 = vpop.f32.mrb[0].mxu0
        %v1374 = vadd.f32 0.0, %v1373
        %v1375 = vpop.f32.mrb[0].mxu0
        %v1376 = vpop.f32.mrb[0].mxu0
        %v1377 = vadd.f32 0.0, %v1376
        %v1378 = vpop.f32.mrb[0].mxu0
        %1379 = vmatprep.mubr.bf16.mxu0 0
        %1380 = vmatmul.mubr.bf16.gmra.mrb[0].mxu0 %v1300
        %v1381 = vpop.f32.mrb[0].mxu0
        %v1382 = vadd.f32 0.0, %v1381
        %v1383 = vpop.f32.mrb[0].mxu0
        %v1384 = vpop.f32.mrb[0].mxu0
        %v1385 = vadd.f32 0.0, %v1384
        %v1386 = vpop.f32.mrb[0].mxu0
        %1387 = vmatprep.mubr.bf16.mxu0 0
        %1388 = vmatmul.mubr.bf16.gmra.mrb[0].mxu0 %v1303
        %v1389 = vpop.f32.mrb[0].mxu0
        %v1390 = vadd.f32 0.0, %v1389
        %v1391 = vpop.f32.mrb[0].mxu0
        %v1392 = vpop.f32.mrb[0].mxu0
        %v1393 = vadd.f32 0.0, %v1392
        %v1394 = vpop.f32.mrb[0].mxu0
        %1395 = vmatprep.mubr.bf16.mxu0 0
        %1396 = vmatmul.mubr.bf16.gmra.mrb[0].mxu0 %v1306
        %v1397 = vpop.f32.mrb[0].mxu0
        %v1398 = vadd.f32 0.0, %v1397
        %v1399 = vpop.f32.mrb[0].mxu0
        %v1400 = vpop.f32.mrb[0].mxu0
        %v1401 = vadd.f32 0.0, %v1400
        %v1402 = vpop.f32.mrb[0].mxu0
        %1403 = vmatprep.mubr.bf16.mxu0 0
        %1404 = vmatmul.mubr.bf16.gmra.mrb[0].mxu0 %v1309
        %v1405 = vpop.f32.mrb[0].mxu0
        %v1406 = vadd.f32 0.0, %v1405
        %v1407 = vpop.f32.mrb[0].mxu0
        %v1408 = vpop.f32.mrb[0].mxu0
        %v1409 = vadd.f32 0.0, %v1408
        %v1410 = vpop.f32.mrb[0].mxu0
        %1411 = vdwg.mxu0
        %v1412 = vmul.f32 %v1350, %v1115
        %v1413 = vmul.f32 %v1353, %v1116
        %v1414 = vmul.f32 %v1358, %v1117
        %v1415 = vmul.f32 %v1361, %v1118
        %v1416 = vmul.f32 %v1366, %v1119
        %v1417 = vmul.f32 %v1369, %v1120
        %v1418 = vmul.f32 %v1374, %v1121
        %v1419 = vmul.f32 %v1377, %v1122
        %v1420 = vmul.f32 %v1382, %v1123
        %v1421 = vmul.f32 %v1385, %v1124
        %v1422 = vmul.f32 %v1390, %v1125
        %v1423 = vmul.f32 %v1393, %v1126
        %v1424 = vmul.f32 %v1398, %v1127
        %v1425 = vmul.f32 %v1401, %v1128
        %v1426 = vmul.f32 %v1406, %v1129
        %v1427 = vmul.f32 %v1409, %v1130
        %v1428 = vpack.c.bf16 %v1249, %v1249
        %v1429 = vpack.c.bf16 %v1413, %v1412
        %v1430 = vpack.c.bf16 %v1415, %v1414
        %v1431 = vpack.c.bf16 %v1417, %v1416
        %v1432 = vpack.c.bf16 %v1419, %v1418
        %v1433 = vpack.c.bf16 %v1421, %v1420
        %v1434 = vpack.c.bf16 %v1423, %v1422
        %v1435 = vpack.c.bf16 %v1425, %v1424
        %v1436 = vpack.c.bf16 %v1427, %v1426
        %1437 = vmatprep.subr.bf16.mxu0 0
        %1438 = vmatpush1.bf16.msra.mxu0 %v1429
        %1439 = vmatprep.subr.bf16.mxu0 0
        %1440 = vmatpush1.bf16.msra.mxu0 %v1430
        %1441 = vmatprep.subr.bf16.mxu0 0
        %1442 = vmatpush1.bf16.msra.mxu0 %v1431
        %1443 = vmatprep.subr.bf16.mxu0 0
        %1444 = vmatpush1.bf16.msra.mxu0 %v1432
        %1445 = vmatprep.subr.bf16.mxu0 0
        %1446 = vmatpush1.bf16.msra.mxu0 %v1433
        %1447 = vmatprep.subr.bf16.mxu0 0
        %1448 = vmatpush1.bf16.msra.mxu0 %v1434
        %1449 = vmatprep.subr.bf16.mxu0 0
        %1450 = vmatpush1.bf16.msra.mxu0 %v1435
        %1451 = vmatprep.subr.bf16.mxu0 0
        %1452 = vmatpush1.bf16.msra.mxu0 %v1436
        %1453 = vmatprep.subr.bf16.mxu0 0
        %1454 = vmatpush1.bf16.msra.mxu0 0
        %1455 = vmatprep.subr.bf16.mxu0 0
        %1456 = vmatpush1.bf16.msra.mxu0 0
        %1457 = vmatprep.subr.bf16.mxu0 0
        %1458 = vmatpush1.bf16.msra.mxu0 0
        %1459 = vmatprep.subr.bf16.mxu0 0
        %1460 = vmatpush1.bf16.msra.mxu0 0
        %1461 = vmatprep.subr.bf16.mxu0 0
        %1462 = vmatpush1.bf16.msra.mxu0 0
        %1463 = vmatprep.subr.bf16.mxu0 0
        %1464 = vmatpush1.bf16.msra.mxu0 0
        %1465 = vmatprep.subr.bf16.mxu0 0
        %1466 = vmatpush1.bf16.msra.mxu0 0
        %1467 = vmatprep.subr.bf16.mxu0 0
        %1468 = vmatpush1.bf16.msra.mxu0 0
        %1469 = vmatprep.mubr.bf16.mxu0 0
        %1470 = vmatmul.mubr.bf16.gmra.mrb[0].mxu0 %v1428
        %v1471 = vpop.f32.mrb[0].mxu0
        %v1472 = vadd.f32 0.0, %v1471
        %v1473 = vpop.f32.mrb[0].mxu0
        %v1474 = vpop.f32.mrb[0].mxu0
        %v1475 = vpop.f32.mrb[0].mxu0
        %1476 = vdwg.mxu0
        %v1477 = vrot.slane %v1072, 4
        %v1478 = vmax.f32 %v1072, %v1477
        %v1479 = vrot.slane %v1478, 2
        %v1480 = vmax.f32 %v1478, %v1479
        %v1481 = vrot.slane %v1480, 1
        %v1482 = vmax.f32 %v1480, %v1481
        %v1483 = vsub.f32 %v1072, %v1482
        %v1484 = vmul.f32 %v1483, 1.442695
        %v1485 = vpow.pop %v1484
        %v1486 = vrot.slane %v1485, 4
        %v1487 = vadd.f32 %v1485, %v1486
        %v1488 = vrot.slane %v1487, 2
        %v1489 = vadd.f32 %v1487, %v1488
        %v1490 = vrot.slane %v1489, 1
        %v1491 = vadd.f32 %v1489, %v1490
        %v1492 = vrcp.pop %v1491
        %v1493 = vmul.f32 %v1485, %v1492
        %v1494 = vpack.c.bf16 %v1493, %v1493
        %v1495 = vpack.c.bf16 %v1112, %v1112
        %1496 = vxpose.xlu0.c.b16.start [1/8] %v1494, 128
        %1497 = vxpose.xlu0.c.b16.cont [2/8] 0, 128
        %1498 = vxpose.xlu0.c.b16.cont [3/8] 0, 128
        %1499 = vxpose.xlu0.c.b16.cont [4/8] 0, 128
        %1500 = vxpose.xlu0.c.b16.cont [5/8] 0, 128
        %1501 = vxpose.xlu0.c.b16.cont [6/8] 0, 128
        %1502 = vxpose.xlu0.c.b16.cont [7/8] 0, 128
        %1503 = vxpose.xlu0.c.b16.end [8/8] 0, 128
        %v1504 = vpop.trf.xlu0
        %v1505 = vpop.trf.xlu0
        %v1506 = vpop.trf.xlu0
        %v1507 = vpop.trf.xlu0
        %v1508 = vpop.trf.xlu0
        %v1509 = vpop.trf.xlu0
        %v1510 = vpop.trf.xlu0
        %v1511 = vpop.trf.xlu0
        %v1513 = vsel %vm1286, %v1504, 0
        %v1516 = vsel %vm1286, %v1505, 0
        %v1519 = vsel %vm1286, %v1506, 0
        %v1522 = vsel %vm1286, %v1507, 0
        %v1525 = vsel %vm1286, %v1508, 0
        %v1528 = vsel %vm1286, %v1509, 0
        %v1531 = vsel %vm1286, %v1510, 0
        %v1534 = vsel %vm1286, %v1511, 0
        %v1537 = vsel %vm1311, %v1495, 0
        %1539 = vmatprep.subr.bf16.mxu0 0
        %1540 = vmatpush1.bf16.msra.mxu0 %v1537
        %1541 = vmatprep.subr.bf16.mxu0 0
        %1542 = vmatpush1.bf16.msra.mxu0 0
        %1543 = vmatprep.subr.bf16.mxu0 0
        %1544 = vmatpush1.bf16.msra.mxu0 0
        %1545 = vmatprep.subr.bf16.mxu0 0
        %1546 = vmatpush1.bf16.msra.mxu0 0
        %1547 = vmatprep.subr.bf16.mxu0 0
        %1548 = vmatpush1.bf16.msra.mxu0 0
        %1549 = vmatprep.subr.bf16.mxu0 0
        %1550 = vmatpush1.bf16.msra.mxu0 0
        %1551 = vmatprep.subr.bf16.mxu0 0
        %1552 = vmatpush1.bf16.msra.mxu0 0
        %1553 = vmatprep.subr.bf16.mxu0 0
        %1554 = vmatpush1.bf16.msra.mxu0 0
        %1555 = vmatprep.subr.bf16.mxu0 0
        %1556 = vmatpush1.bf16.msra.mxu0 0
        %1557 = vmatprep.subr.bf16.mxu0 0
        %1558 = vmatpush1.bf16.msra.mxu0 0
        %1559 = vmatprep.subr.bf16.mxu0 0
        %1560 = vmatpush1.bf16.msra.mxu0 0
        %1561 = vmatprep.subr.bf16.mxu0 0
        %1562 = vmatpush1.bf16.msra.mxu0 0
        %1563 = vmatprep.subr.bf16.mxu0 0
        %1564 = vmatpush1.bf16.msra.mxu0 0
        %1565 = vmatprep.subr.bf16.mxu0 0
        %1566 = vmatpush1.bf16.msra.mxu0 0
        %1567 = vmatprep.subr.bf16.mxu0 0
        %1568 = vmatpush1.bf16.msra.mxu0 0
        %1569 = vmatprep.subr.bf16.mxu0 0
        %1570 = vmatpush1.bf16.msra.mxu0 0
        %1571 = vmatprep.mubr.bf16.mxu0 0
        %1572 = vmatmul.mubr.bf16.gmra.mrb[0].mxu0 %v1513
        %v1573 = vpop.f32.mrb[0].mxu0
        %v1574 = vadd.f32 0.0, %v1573
        %v1575 = vpop.f32.mrb[0].mxu0
        %v1576 = vpop.f32.mrb[0].mxu0
        %v1577 = vadd.f32 0.0, %v1576
        %v1578 = vpop.f32.mrb[0].mxu0
        %1579 = vmatprep.mubr.bf16.mxu0 0
        %1580 = vmatmul.mubr.bf16.gmra.mrb[0].mxu0 %v1516
        %v1581 = vpop.f32.mrb[0].mxu0
        %v1582 = vadd.f32 0.0, %v1581
        %v1583 = vpop.f32.mrb[0].mxu0
        %v1584 = vpop.f32.mrb[0].mxu0
        %v1585 = vadd.f32 0.0, %v1584
        %v1586 = vpop.f32.mrb[0].mxu0
        %1587 = vmatprep.mubr.bf16.mxu0 0
        %1588 = vmatmul.mubr.bf16.gmra.mrb[0].mxu0 %v1519
        %v1589 = vpop.f32.mrb[0].mxu0
        %v1590 = vadd.f32 0.0, %v1589
        %v1591 = vpop.f32.mrb[0].mxu0
        %v1592 = vpop.f32.mrb[0].mxu0
        %v1593 = vadd.f32 0.0, %v1592
        %v1594 = vpop.f32.mrb[0].mxu0
        %1595 = vmatprep.mubr.bf16.mxu0 0
        %1596 = vmatmul.mubr.bf16.gmra.mrb[0].mxu0 %v1522
        %v1597 = vpop.f32.mrb[0].mxu0
        %v1598 = vadd.f32 0.0, %v1597
        %v1599 = vpop.f32.mrb[0].mxu0
        %v1600 = vpop.f32.mrb[0].mxu0
        %v1601 = vadd.f32 0.0, %v1600
        %v1602 = vpop.f32.mrb[0].mxu0
        %1603 = vmatprep.mubr.bf16.mxu0 0
        %1604 = vmatmul.mubr.bf16.gmra.mrb[0].mxu0 %v1525
        %v1605 = vpop.f32.mrb[0].mxu0
        %v1606 = vadd.f32 0.0, %v1605
        %v1607 = vpop.f32.mrb[0].mxu0
        %v1608 = vpop.f32.mrb[0].mxu0
        %v1609 = vadd.f32 0.0, %v1608
        %v1610 = vpop.f32.mrb[0].mxu0
        %1611 = vmatprep.mubr.bf16.mxu0 0
        %1612 = vmatmul.mubr.bf16.gmra.mrb[0].mxu0 %v1528
        %v1613 = vpop.f32.mrb[0].mxu0
        %v1614 = vadd.f32 0.0, %v1613
        %v1615 = vpop.f32.mrb[0].mxu0
        %v1616 = vpop.f32.mrb[0].mxu0
        %v1617 = vadd.f32 0.0, %v1616
        %v1618 = vpop.f32.mrb[0].mxu0
        %1619 = vmatprep.mubr.bf16.mxu0 0
        %1620 = vmatmul.mubr.bf16.gmra.mrb[0].mxu0 %v1531
        %v1621 = vpop.f32.mrb[0].mxu0
        %v1622 = vadd.f32 0.0, %v1621
        %v1623 = vpop.f32.mrb[0].mxu0
        %v1624 = vpop.f32.mrb[0].mxu0
        %v1625 = vadd.f32 0.0, %v1624
        %v1626 = vpop.f32.mrb[0].mxu0
        %1627 = vmatprep.mubr.bf16.mxu0 0
        %1628 = vmatmul.mubr.bf16.gmra.mrb[0].mxu0 %v1534
        %v1629 = vpop.f32.mrb[0].mxu0
        %v1630 = vadd.f32 0.0, %v1629
        %v1631 = vpop.f32.mrb[0].mxu0
        %v1632 = vpop.f32.mrb[0].mxu0
        %v1633 = vadd.f32 0.0, %v1632
        %v1634 = vpop.f32.mrb[0].mxu0
        %1635 = vdwg.mxu0
        %v1636 = vmul.f32 %v1574, %v1115
        %v1637 = vmul.f32 %v1577, %v1116
        %v1638 = vmul.f32 %v1582, %v1117
        %v1639 = vmul.f32 %v1585, %v1118
        %v1640 = vmul.f32 %v1590, %v1119
        %v1641 = vmul.f32 %v1593, %v1120
        %v1642 = vmul.f32 %v1598, %v1121
        %v1643 = vmul.f32 %v1601, %v1122
        %v1644 = vmul.f32 %v1606, %v1123
        %v1645 = vmul.f32 %v1609, %v1124
        %v1646 = vmul.f32 %v1614, %v1125
        %v1647 = vmul.f32 %v1617, %v1126
        %v1648 = vmul.f32 %v1622, %v1127
        %v1649 = vmul.f32 %v1625, %v1128
        %v1650 = vmul.f32 %v1630, %v1129
        %v1651 = vmul.f32 %v1633, %v1130
        %v1652 = vpack.c.bf16 %v1250, %v1250
        %v1653 = vpack.c.bf16 %v1637, %v1636
        %v1654 = vpack.c.bf16 %v1639, %v1638
        %v1655 = vpack.c.bf16 %v1641, %v1640
        %v1656 = vpack.c.bf16 %v1643, %v1642
        %v1657 = vpack.c.bf16 %v1645, %v1644
        %v1658 = vpack.c.bf16 %v1647, %v1646
        %v1659 = vpack.c.bf16 %v1649, %v1648
        %v1660 = vpack.c.bf16 %v1651, %v1650
        %1661 = vmatprep.subr.bf16.mxu0 0
        %1662 = vmatpush1.bf16.msra.mxu0 %v1653
        %1663 = vmatprep.subr.bf16.mxu0 0
        %1664 = vmatpush1.bf16.msra.mxu0 %v1654
        %1665 = vmatprep.subr.bf16.mxu0 0
        %1666 = vmatpush1.bf16.msra.mxu0 %v1655
        %1667 = vmatprep.subr.bf16.mxu0 0
        %1668 = vmatpush1.bf16.msra.mxu0 %v1656
        %1669 = vmatprep.subr.bf16.mxu0 0
        %1670 = vmatpush1.bf16.msra.mxu0 %v1657
        %1671 = vmatprep.subr.bf16.mxu0 0
        %1672 = vmatpush1.bf16.msra.mxu0 %v1658
        %1673 = vmatprep.subr.bf16.mxu0 0
        %1674 = vmatpush1.bf16.msra.mxu0 %v1659
        %1675 = vmatprep.subr.bf16.mxu0 0
        %1676 = vmatpush1.bf16.msra.mxu0 %v1660
        %1677 = vmatprep.subr.bf16.mxu0 0
        %1678 = vmatpush1.bf16.msra.mxu0 0
        %1679 = vmatprep.subr.bf16.mxu0 0
        %1680 = vmatpush1.bf16.msra.mxu0 0
        %1681 = vmatprep.subr.bf16.mxu0 0
        %1682 = vmatpush1.bf16.msra.mxu0 0
        %1683 = vmatprep.subr.bf16.mxu0 0
        %1684 = vmatpush1.bf16.msra.mxu0 0
        %1685 = vmatprep.subr.bf16.mxu0 0
        %1686 = vmatpush1.bf16.msra.mxu0 0
        %1687 = vmatprep.subr.bf16.mxu0 0
        %1688 = vmatpush1.bf16.msra.mxu0 0
        %1689 = vmatprep.subr.bf16.mxu0 0
        %1690 = vmatpush1.bf16.msra.mxu0 0
        %1691 = vmatprep.subr.bf16.mxu0 0
        %1692 = vmatpush1.bf16.msra.mxu0 0
        %1693 = vmatprep.mubr.bf16.mxu0 0
        %1694 = vmatmul.mubr.bf16.gmra.mrb[0].mxu0 %v1652
        %v1695 = vpop.f32.mrb[0].mxu0
        %v1696 = vadd.f32 0.0, %v1695
        %v1697 = vpop.f32.mrb[0].mxu0
        %v1698 = vpop.f32.mrb[0].mxu0
        %v1699 = vpop.f32.mrb[0].mxu0
        %1700 = vdwg.mxu0
        %v1701 = vpack.c.bf16 %v1696, %v1472
        %v1702 = vld [vmem:[%s645] sm:$0xf]
        %v1703 = vld [vmem:[%s645 + $0x4] sm:$0xf]
        %v1704 = vld [vmem:[%s645 + $0x8] sm:$0xf]
        %v1705 = vld [vmem:[%s645 + $0xc] sm:$0xf]
        %v1706 = vld [vmem:[%s645 + $0x10] sm:$0xf]
        %v1707 = vld [vmem:[%s645 + $0x14] sm:$0xf]
        %v1708 = vld [vmem:[%s645 + $0x18] sm:$0xf]
        %v1709 = vld [vmem:[%s645 + $0x1c] sm:$0xf]
        %v1710 = vld [vmem:[%s645 + $0x20] sm:$0xf]
        %v1711 = vld [vmem:[%s645 + $0x24] sm:$0xf]
        %v1712 = vld [vmem:[%s645 + $0x28] sm:$0xf]
        %v1713 = vld [vmem:[%s645 + $0x2c] sm:$0xf]
        %v1714 = vld [vmem:[%s645 + $0x30] sm:$0xf]
        %v1715 = vld [vmem:[%s645 + $0x34] sm:$0xf]
        %v1716 = vld [vmem:[%s645 + $0x38] sm:$0xf]
        %v1717 = vld [vmem:[%s645 + $0x3c] sm:$0xf]
        %v1718 = vld [vmem:[%s777] sm:$0x1]
        %v1720 = vlaneseq
        %v1721 = vshrl.u32 %v1720, 7
        %v1722 = vsub.s32 0, %v1721
        %v1723 = vrot.slane %v1718, %v1722
        %v1741 = vunpack.c.l.b16 %v1702
        %v1742 = vunpack.c.l.b16 %v1703
        %v1743 = vunpack.c.l.b16 %v1704
        %v1744 = vunpack.c.l.b16 %v1705
        %v1745 = vunpack.c.l.b16 %v1706
        %v1746 = vunpack.c.l.b16 %v1707
        %v1747 = vunpack.c.l.b16 %v1708
        %v1748 = vunpack.c.l.b16 %v1709
        %v1749 = vunpack.c.l.b16 %v1710
        %v1750 = vunpack.c.l.b16 %v1711
        %v1751 = vunpack.c.l.b16 %v1712
        %v1752 = vunpack.c.l.b16 %v1713
        %v1753 = vunpack.c.l.b16 %v1714
        %v1754 = vunpack.c.l.b16 %v1715
        %v1755 = vunpack.c.l.b16 %v1716
        %v1756 = vunpack.c.l.b16 %v1717
        %v1757 = vpack.c.b16 %v1742, %v1741
        %v1758 = vpack.c.b16 %v1744, %v1743
        %v1759 = vpack.c.b16 %v1746, %v1745
        %v1760 = vpack.c.b16 %v1748, %v1747
        %v1761 = vpack.c.b16 %v1750, %v1749
        %v1762 = vpack.c.b16 %v1752, %v1751
        %v1763 = vpack.c.b16 %v1754, %v1753
        %v1764 = vpack.c.b16 %v1756, %v1755
        %1773 = vmatprep.subr.bf16.mxu0 0
        %1774 = vmatpush1.bf16.msra.mxu0 %v1757
        %1775 = vmatprep.subr.bf16.mxu0 0
        %1776 = vmatpush1.bf16.msra.mxu0 %v1758
        %1777 = vmatprep.subr.bf16.mxu0 0
        %1778 = vmatpush1.bf16.msra.mxu0 %v1759
        %1779 = vmatprep.subr.bf16.mxu0 0
        %1780 = vmatpush1.bf16.msra.mxu0 %v1760
        %1781 = vmatprep.subr.bf16.mxu0 0
        %1782 = vmatpush1.bf16.msra.mxu0 %v1761
        %1783 = vmatprep.subr.bf16.mxu0 0
        %1784 = vmatpush1.bf16.msra.mxu0 %v1762
        %1785 = vmatprep.subr.bf16.mxu0 0
        %1786 = vmatpush1.bf16.msra.mxu0 %v1763
        %1787 = vmatprep.subr.bf16.mxu0 0
        %1788 = vmatpush1.bf16.msra.mxu0 %v1764
        %1789 = vmatprep.subr.bf16.mxu0 0
        %1790 = vmatpush1.bf16.msra.mxu0 0
        %1791 = vmatprep.subr.bf16.mxu0 0
        %1792 = vmatpush1.bf16.msra.mxu0 0
        %1793 = vmatprep.subr.bf16.mxu0 0
        %1794 = vmatpush1.bf16.msra.mxu0 0
        %1795 = vmatprep.subr.bf16.mxu0 0
        %1796 = vmatpush1.bf16.msra.mxu0 0
        %1797 = vmatprep.subr.bf16.mxu0 0
        %1798 = vmatpush1.bf16.msra.mxu0 0
        %1799 = vmatprep.subr.bf16.mxu0 0
        %1800 = vmatpush1.bf16.msra.mxu0 0
        %1801 = vmatprep.subr.bf16.mxu0 0
        %1802 = vmatpush1.bf16.msra.mxu0 0
        %1803 = vmatprep.subr.bf16.mxu0 0
        %1804 = vmatpush1.bf16.msra.mxu0 0
        %1805 = vmatprep.mubr.bf16.mxu0 0
        %1806 = vmatmul.mubr.bf16.gmra.mrb[0].mxu0 %v1701
        %v1807 = vpop.f32.mrb[0].mxu0
        %v1808 = vadd.f32 %v1723, %v1807
        %v1809 = vpop.f32.mrb[0].mxu0
        %v1810 = vpop.f32.mrb[0].mxu0
        %v1811 = vadd.f32 %v1723, %v1810
        %v1812 = vpop.f32.mrb[0].mxu0
        %1813 = vdwg.mxu0
        %v1814 = vadd.f32 %v805, %v1808
        %v1815 = vadd.f32 %v806, %v1811
        %v1816 = vld [vmem:[%s780] sm:$0x1]
        %v1817 = vld [vmem:[%s783] sm:$0x1]
        %1818 = vadd.xlane.f32.xlu0 %v1814
        %v1819 = vpop.xlane.xlu0 %1818
        %1820 = vadd.xlane.f32.xlu0 %v1815
        %v1821 = vpop.xlane.xlu0 %1820
        %v1822 = vmul.f32 %v1819, 0.03125
        %v1823 = vmul.f32 %v1821, 0.03125
        %v1824 = vmul.f32 %v1814, %v1814
        %v1825 = vmul.f32 %v1815, %v1815
        %1826 = vadd.xlane.f32.xlu0 %v1824
        %v1827 = vpop.xlane.xlu0 %1826
        %1828 = vadd.xlane.f32.xlu0 %v1825
        %v1829 = vpop.xlane.xlu0 %1828
        %v1830 = vmul.f32 %v1827, 0.03125
        %v1831 = vmul.f32 %v1829, 0.03125
        %v1832 = vmul.f32 %v1822, %v1822
        %v1833 = vmul.f32 %v1823, %v1823
        %v1834 = vsub.f32 %v1830, %v1832
        %v1835 = vsub.f32 %v1831, %v1833
        %v1836 = vmax.f32 %v1834, 0.0
        %v1837 = vmax.f32 %v1835, 0.0
        %v1838 = vsub.f32 %v1814, %v1822
        %v1839 = vsub.f32 %v1815, %v1823
        %v1840 = vadd.f32 %v1836, 1e-05
        %v1841 = vadd.f32 %v1837, 1e-05
        %v1842 = vrsqrt.pop %v1840
        %v1843 = vrsqrt.pop %v1841
        %v1844 = vmul.f32 %v1838, %v1842
        %v1845 = vmul.f32 %v1839, %v1843
        %v1847 = vlaneseq
        %v1848 = vshrl.u32 %v1847, 7
        %v1849 = vsub.s32 0, %v1848
        %v1850 = vrot.slane %v1816, %v1849
        %v1852 = vmul.f32 %v1844, %v1850
        %v1853 = vmul.f32 %v1845, %v1850
        %v1855 = vlaneseq
        %v1856 = vshrl.u32 %v1855, 7
        %v1857 = vsub.s32 0, %v1856
        %v1858 = vrot.slane %v1817, %v1857
        %v1860 = vadd.f32 %v1852, %v1858
        %v1861 = vadd.f32 %v1853, %v1858
        %v1862 = vpack.c.bf16 %v1861, %v1860
        %v1863 = vld [vmem:[%s654] sm:$0xf]
        %v1864 = vld [vmem:[%s654 + $0x4] sm:$0xf]
        %v1865 = vld [vmem:[%s654 + $0x8] sm:$0xf]
        %v1866 = vld [vmem:[%s654 + $0xc] sm:$0xf]
        %v1867 = vld [vmem:[%s654 + $0x10] sm:$0xf]
        %v1868 = vld [vmem:[%s654 + $0x14] sm:$0xf]
        %v1869 = vld [vmem:[%s654 + $0x18] sm:$0xf]
        %v1870 = vld [vmem:[%s654 + $0x1c] sm:$0xf]
        %v1871 = vld [vmem:[%s654 + $0x20] sm:$0xf]
        %v1872 = vld [vmem:[%s654 + $0x24] sm:$0xf]
        %v1873 = vld [vmem:[%s654 + $0x28] sm:$0xf]
        %v1874 = vld [vmem:[%s654 + $0x2c] sm:$0xf]
        %v1875 = vld [vmem:[%s654 + $0x30] sm:$0xf]
        %v1876 = vld [vmem:[%s654 + $0x34] sm:$0xf]
        %v1877 = vld [vmem:[%s654 + $0x38] sm:$0xf]
        %v1878 = vld [vmem:[%s654 + $0x3c] sm:$0xf]
        %v1879 = vld [vmem:[%s786] sm:$0x1]
        %v1881 = vlaneseq
        %v1882 = vshrl.u32 %v1881, 7
        %v1883 = vsub.s32 0, %v1882
        %v1884 = vrot.slane %v1879, %v1883
        %v1902 = vunpack.c.l.b16 %v1863
        %v1903 = vunpack.c.l.b16 %v1864
        %v1904 = vunpack.c.l.b16 %v1865
        %v1905 = vunpack.c.l.b16 %v1866
        %v1906 = vunpack.c.l.b16 %v1867
        %v1907 = vunpack.c.l.b16 %v1868
        %v1908 = vunpack.c.l.b16 %v1869
        %v1909 = vunpack.c.l.b16 %v1870
        %v1910 = vunpack.c.l.b16 %v1871
        %v1911 = vunpack.c.l.b16 %v1872
        %v1912 = vunpack.c.l.b16 %v1873
        %v1913 = vunpack.c.l.b16 %v1874
        %v1914 = vunpack.c.l.b16 %v1875
        %v1915 = vunpack.c.l.b16 %v1876
        %v1916 = vunpack.c.l.b16 %v1877
        %v1917 = vunpack.c.l.b16 %v1878
        %v1918 = vpack.c.b16 %v1903, %v1902
        %v1919 = vpack.c.b16 %v1905, %v1904
        %v1920 = vpack.c.b16 %v1907, %v1906
        %v1921 = vpack.c.b16 %v1909, %v1908
        %v1922 = vpack.c.b16 %v1911, %v1910
        %v1923 = vpack.c.b16 %v1913, %v1912
        %v1924 = vpack.c.b16 %v1915, %v1914
        %v1925 = vpack.c.b16 %v1917, %v1916
        %1934 = vmatprep.subr.bf16.mxu0 0
        %1935 = vmatpush1.bf16.msra.mxu0 %v1918
        %1936 = vmatprep.subr.bf16.mxu0 0
        %1937 = vmatpush1.bf16.msra.mxu0 %v1919
        %1938 = vmatprep.subr.bf16.mxu0 0
        %1939 = vmatpush1.bf16.msra.mxu0 %v1920
        %1940 = vmatprep.subr.bf16.mxu0 0
        %1941 = vmatpush1.bf16.msra.mxu0 %v1921
        %1942 = vmatprep.subr.bf16.mxu0 0
        %1943 = vmatpush1.bf16.msra.mxu0 %v1922
        %1944 = vmatprep.subr.bf16.mxu0 0
        %1945 = vmatpush1.bf16.msra.mxu0 %v1923
        %1946 = vmatprep.subr.bf16.mxu0 0
        %1947 = vmatpush1.bf16.msra.mxu0 %v1924
        %1948 = vmatprep.subr.bf16.mxu0 0
        %1949 = vmatpush1.bf16.msra.mxu0 %v1925
        %1950 = vmatprep.subr.bf16.mxu0 0
        %1951 = vmatpush1.bf16.msra.mxu0 0
        %1952 = vmatprep.subr.bf16.mxu0 0
        %1953 = vmatpush1.bf16.msra.mxu0 0
        %1954 = vmatprep.subr.bf16.mxu0 0
        %1955 = vmatpush1.bf16.msra.mxu0 0
        %1956 = vmatprep.subr.bf16.mxu0 0
        %1957 = vmatpush1.bf16.msra.mxu0 0
        %1958 = vmatprep.subr.bf16.mxu0 0
        %1959 = vmatpush1.bf16.msra.mxu0 0
        %1960 = vmatprep.subr.bf16.mxu0 0
        %1961 = vmatpush1.bf16.msra.mxu0 0
        %1962 = vmatprep.subr.bf16.mxu0 0
        %1963 = vmatpush1.bf16.msra.mxu0 0
        %1964 = vmatprep.subr.bf16.mxu0 0
        %1965 = vmatpush1.bf16.msra.mxu0 0
        %1966 = vmatprep.mubr.bf16.mxu0 0
        %1967 = vmatmul.mubr.bf16.gmra.mrb[0].mxu0 %v1862
        %v1968 = vpop.f32.mrb[0].mxu0
        %v1969 = vadd.f32 %v1884, %v1968
        %v1970 = vpop.f32.mrb[0].mxu0
        %v1971 = vpop.f32.mrb[0].mxu0
        %v1972 = vadd.f32 %v1884, %v1971
        %v1973 = vpop.f32.mrb[0].mxu0
        %1974 = vdwg.mxu0
        %v1975 = vmax.f32 %v1969, 0.0
        %v1976 = vmax.f32 %v1972, 0.0
        %v1977 = vpack.c.bf16 %v1976, %v1975
        %v1978 = vld [vmem:[%s663] sm:$0xf]
        %v1979 = vld [vmem:[%s663 + $0x4] sm:$0xf]
        %v1980 = vld [vmem:[%s663 + $0x8] sm:$0xf]
        %v1981 = vld [vmem:[%s663 + $0xc] sm:$0xf]
        %v1982 = vld [vmem:[%s663 + $0x10] sm:$0xf]
        %v1983 = vld [vmem:[%s663 + $0x14] sm:$0xf]
        %v1984 = vld [vmem:[%s663 + $0x18] sm:$0xf]
        %v1985 = vld [vmem:[%s663 + $0x1c] sm:$0xf]
        %v1986 = vld [vmem:[%s663 + $0x20] sm:$0xf]
        %v1987 = vld [vmem:[%s663 + $0x24] sm:$0xf]
        %v1988 = vld [vmem:[%s663 + $0x28] sm:$0xf]
        %v1989 = vld [vmem:[%s663 + $0x2c] sm:$0xf]
        %v1990 = vld [vmem:[%s663 + $0x30] sm:$0xf]
        %v1991 = vld [vmem:[%s663 + $0x34] sm:$0xf]
        %v1992 = vld [vmem:[%s663 + $0x38] sm:$0xf]
        %v1993 = vld [vmem:[%s663 + $0x3c] sm:$0xf]
        %v1994 = vld [vmem:[%s789] sm:$0x1]
        %v1996 = vlaneseq
        %v1997 = vshrl.u32 %v1996, 7
        %v1998 = vsub.s32 0, %v1997
        %v1999 = vrot.slane %v1994, %v1998
        %v2017 = vunpack.c.l.b16 %v1978
        %v2018 = vunpack.c.l.b16 %v1979
        %v2019 = vunpack.c.l.b16 %v1980
        %v2020 = vunpack.c.l.b16 %v1981
        %v2021 = vunpack.c.l.b16 %v1982
        %v2022 = vunpack.c.l.b16 %v1983
        %v2023 = vunpack.c.l.b16 %v1984
        %v2024 = vunpack.c.l.b16 %v1985
        %v2025 = vunpack.c.l.b16 %v1986
        %v2026 = vunpack.c.l.b16 %v1987
        %v2027 = vunpack.c.l.b16 %v1988
        %v2028 = vunpack.c.l.b16 %v1989
        %v2029 = vunpack.c.l.b16 %v1990
        %v2030 = vunpack.c.l.b16 %v1991
        %v2031 = vunpack.c.l.b16 %v1992
        %v2032 = vunpack.c.l.b16 %v1993
        %v2033 = vpack.c.b16 %v2018, %v2017
        %v2034 = vpack.c.b16 %v2020, %v2019
        %v2035 = vpack.c.b16 %v2022, %v2021
        %v2036 = vpack.c.b16 %v2024, %v2023
        %v2037 = vpack.c.b16 %v2026, %v2025
        %v2038 = vpack.c.b16 %v2028, %v2027
        %v2039 = vpack.c.b16 %v2030, %v2029
        %v2040 = vpack.c.b16 %v2032, %v2031
        %2049 = vmatprep.subr.bf16.mxu0 0
        %2050 = vmatpush1.bf16.msra.mxu0 %v2033
        %2051 = vmatprep.subr.bf16.mxu0 0
        %2052 = vmatpush1.bf16.msra.mxu0 %v2034
        %2053 = vmatprep.subr.bf16.mxu0 0
        %2054 = vmatpush1.bf16.msra.mxu0 %v2035
        %2055 = vmatprep.subr.bf16.mxu0 0
        %2056 = vmatpush1.bf16.msra.mxu0 %v2036
        %2057 = vmatprep.subr.bf16.mxu0 0
        %2058 = vmatpush1.bf16.msra.mxu0 %v2037
        %2059 = vmatprep.subr.bf16.mxu0 0
        %2060 = vmatpush1.bf16.msra.mxu0 %v2038
        %2061 = vmatprep.subr.bf16.mxu0 0
        %2062 = vmatpush1.bf16.msra.mxu0 %v2039
        %2063 = vmatprep.subr.bf16.mxu0 0
        %2064 = vmatpush1.bf16.msra.mxu0 %v2040
        %2065 = vmatprep.subr.bf16.mxu0 0
        %2066 = vmatpush1.bf16.msra.mxu0 0
        %2067 = vmatprep.subr.bf16.mxu0 0
        %2068 = vmatpush1.bf16.msra.mxu0 0
        %2069 = vmatprep.subr.bf16.mxu0 0
        %2070 = vmatpush1.bf16.msra.mxu0 0
        %2071 = vmatprep.subr.bf16.mxu0 0
        %2072 = vmatpush1.bf16.msra.mxu0 0
        %2073 = vmatprep.subr.bf16.mxu0 0
        %2074 = vmatpush1.bf16.msra.mxu0 0
        %2075 = vmatprep.subr.bf16.mxu0 0
        %2076 = vmatpush1.bf16.msra.mxu0 0
        %2077 = vmatprep.subr.bf16.mxu0 0
        %2078 = vmatpush1.bf16.msra.mxu0 0
        %2079 = vmatprep.subr.bf16.mxu0 0
        %2080 = vmatpush1.bf16.msra.mxu0 0
        %2081 = vmatprep.mubr.bf16.mxu0 0
        %2082 = vmatmul.mubr.bf16.gmra.mrb[0].mxu0 %v1977
        %v2083 = vpop.f32.mrb[0].mxu0
        %v2084 = vadd.f32 %v1999, %v2083
        %v2085 = vpop.f32.mrb[0].mxu0
        %v2086 = vpop.f32.mrb[0].mxu0
        %v2087 = vadd.f32 %v1999, %v2086
        %v2088 = vpop.f32.mrb[0].mxu0
        %2089 = vdwg.mxu0
        %v2090 = vadd.f32 %v1814, %v2084
        %v2091 = vadd.f32 %v1815, %v2087
        %2092 = vst [vmem:[%s794] sm:$0xff] %v2090
        %2093 = vst [vmem:[%s794 + $0x8] sm:$0xff] %v2091
        %s2094 = smul.u32 2, %s39
        %p2095 = scmp.lt.s32.totalorder %s2094, 1
        %s2096 = scalar_select %p2095, %s2094, 1
        %s2097 = smul.addr %s2096, 8
        %s2098 = scalar_lea.vmem %s15, %s2097
        // Predicated region
        $region105: #{transformer_encoder_forward.1} parent=79 // pred_check
          %p2099 = pneg %p445
        $region106: #{transformer_encoder_forward.1} parent=79 // pred_check_branch
          %2101 = sbr.rel (%p2099) target = $region108
        $region107: #{transformer_encoder_forward.1} parent=79 // pred_region
          %s2102 = smul.u32 2, %s39
        $region108: #{transformer_encoder_forward.1} parent=79 // pred_fallthru
          _
        // Predicated region
        $region109: #{transformer_encoder_forward.1} parent=79 // pred_check
          %p2103 = pneg %p445
        $region110: #{transformer_encoder_forward.1} parent=79 // pred_check_branch
          %2105 = sbr.rel (%p2103) target = $region112
        $region111: #{transformer_encoder_forward.1} parent=79 // pred_region
          %s2106 = smul.u32 2, %s39
          %p2107 = scmp.lt.s32.totalorder %s2106, 1
          %s2108 = scalar_select %p2107, %s2106, 1
          %s2109 = smul.addr %s2108, 8
          %s2110 = scalar_lea.vmem %s15, %s2109
        $region112: #{transformer_encoder_forward.1} parent=79 // pred_fallthru
          _
      $region80: #{transformer_encoder_forward.1} parent=5 // pred_fallthru
        _
      %p2111 = scmp.le.s32.totalorder 2, %s30
      // Predicated region
      $region113: #{transformer_encoder_forward.1} parent=5 // pred_check
        %p2112 = pneg %p2111
      $region114: #{transformer_encoder_forward.1} parent=5 // pred_check_branch
        %2114 = sbr.rel (%p2112) target = $region116
      $region115: #{transformer_encoder_forward.1} parent=5 // pred_region
        %s2115 = ssub.s32 %s30, 2
      $region116: #{transformer_encoder_forward.1} parent=5 // pred_fallthru
        _
    $region6: #{transformer_encoder_forward.1} parent=1 // loop_footer
      %s34 = sadd.s32 1, %s30
    $region7: #{transformer_encoder_forward.1} parent=1 // loop_footer_branch
      %29 = sbr.rel target = $region3
    $region8: #{transformer_encoder_forward.1} parent=1 // loop_exit
      _
    %2116 = vsyncpa [#allocation3], 1
    %s2117 = scalar_lea.sflag [#allocation3], 1
    %2118 = vsyncpa %s2117, 1
    %2119 = vsyncpa [#allocation5], 1
    %s2120 = scalar_lea.sflag [#allocation5], 1
    %2121 = vsyncpa %s2120, 1
    %2122 = vsyncpa [#allocation8], 1
    %s2123 = scalar_lea.sflag [#allocation8], 1
    %2124 = vsyncpa %s2123, 1

</llo_original>
